<compile_context>
chip_gen: v6e
topology: v6e:2x2x1
jax: 0.10.0
libtpu: 0.0.40
codegen_flags: <defaults>
</compile_context>

<pallas_src>
import functools

import jax
import jax.numpy as jnp
from jax import lax
from jax.experimental import pallas as pl
from jax.experimental.pallas import tpu as pltpu

LEAKY_SLOPE = 0.1   # Darknet-style DBL block uses LeakyReLU(0.1)
BN_EPS = 1e-5       # PyTorch BatchNorm2d default eps


def _leaky(x):
    return jnp.where(x > 0, x, LEAKY_SLOPE * x)


def _residual_block_kernel(x_ref, xh_ref, w1_ref, b1_ref, w2_ref, b2_ref,
                           o_ref, halo_ref, sem, *, shortcut, use_im2col):
    # x_ref   : (1, TH, W, C)  act dtype  current row strip (auto-pipelined)
    # xh_ref  : (N, H, W, C)   act dtype  whole input in HBM (pl.ANY, manual DMA)
    # w1_ref  : (C, Cmid)      bf16       1x1 conv weight, BN scale folded in
    # b1_ref  : (1, Cmid)      f32        folded BN bias of block1
    # w2_ref  : (9*Cmid, C) or (9, Cmid, C)  bf16  3x3 conv weight, scale folded in
    # b2_ref  : (1, C)         f32        folded BN bias of block2
    # halo_ref: (2, W, C)      act dtype  landing buffer for the 2 halo rows
    # sem     : DMA semaphores, shape (2,)
    n = pl.program_id(0)
    i = pl.program_id(1)
    ni = pl.num_programs(1)

    TH = x_ref.shape[1]
    W = x_ref.shape[2]
    C = x_ref.shape[3]
    Cmid = w1_ref.shape[1]

    row0 = i * TH
    have_top = i > 0
    have_bot = i < ni - 1

    # Kick off the 1-row halo DMAs early so they overlap with block1 below.
    # Un-fetched halo rows are zeroed so no stale VMEM ever feeds the MXU.
    @pl.when(have_top)
    def _():
        pltpu.make_async_copy(xh_ref.at[n, row0 - 1], halo_ref.at[0],
                              sem.at[0]).start()

    @pl.when(jnp.logical_not(have_top))
    def _():
        halo_ref[0] = jnp.zeros((W, C), halo_ref.dtype)

    @pl.when(have_bot)
    def _():
        pltpu.make_async_copy(xh_ref.at[n, row0 + TH], halo_ref.at[1],
                              sem.at[1]).start()

    @pl.when(jnp.logical_not(have_bot))
    def _():
        halo_ref[1] = jnp.zeros((W, C), halo_ref.dtype)

    x2d = x_ref[0].reshape(TH * W, C)                    # act dtype

    # ---- DBL block 1 on the strip: 1x1 conv == matmul (bf16 in, f32 acc) ----
    h = jnp.dot(x2d.astype(jnp.bfloat16), w1_ref[...],
                preferred_element_type=jnp.float32)      # (TH*W, Cmid)
    h = _leaky(h + b1_ref[...])                          # scale already in w1
    h_bf = h.reshape(TH, W, Cmid).astype(jnp.bfloat16)   # single bf16 cast

    # ---- DBL block 1 on the two halo rows (recompute; masked at borders) ----
    @pl.when(have_top)
    def _():
        pltpu.make_async_copy(xh_ref.at[n, row0 - 1], halo_ref.at[0],
                              sem.at[0]).wait()

    @pl.when(have_bot)
    def _():
        pltpu.make_async_copy(xh_ref.at[n, row0 + TH], halo_ref.at[1],
                              sem.at[1]).wait()

    hx = halo_ref[...].reshape(2 * W, C)
    hh = jnp.dot(hx.astype(jnp.bfloat16), w1_ref[...],
                 preferred_element_type=jnp.float32)
    hh = _leaky(hh + b1_ref[...]).astype(jnp.bfloat16).reshape(2, W, Cmid)
    # The 3x3 conv zero-pads block1's OUTPUT at the image borders (block1(0) != 0),
    # so mask the halo h rows, not the halo x rows.
    zero_row = jnp.zeros((1, W, Cmid), jnp.bfloat16)
    h_top = jnp.where(have_top, hh[0:1], zero_row)
    h_bot = jnp.where(have_bot, hh[1:2], zero_row)

    # H-padded block1 output for this strip, kept entirely in bf16.
    hp = jnp.concatenate([h_top, h_bf, h_bot], axis=0)   # (TH+2, W, Cmid) bf16

    # ---- DBL block 2: 3x3 conv (padding=1) -----------------------------------
    # Column taps via dense shift + zero column; row taps via contiguous
    # leading-axis slices.  Tap order (ki, kj, cin) matches the w2 flattening.
    zcol = jnp.zeros((TH + 2, 1, Cmid), jnp.bfloat16)
    left = jnp.concatenate([zcol, hp[:, :W - 1, :]], axis=1)   # value at x-1
    right = jnp.concatenate([hp[:, 1:, :], zcol], axis=1)      # value at x+1
    cols = (left, hp, right)                                   # kj = 0, 1, 2

    if use_im2col:
        # Single im2col matmul (K = 9*Cmid): best MXU fill when Cmid is small.
        taps = [cols[kj][ki:ki + TH] for ki in range(3) for kj in range(3)]
        patch = jnp.concatenate(taps, axis=-1)                 # (TH, W, 9*Cmid) bf16
        out = jnp.dot(patch.reshape(TH * W, 9 * Cmid), w2_ref[...],
                      preferred_element_type=jnp.float32)
    else:
        # Nine accumulating dots, no materialized patch: K = Cmid already fills
        # the MXU when Cmid >= 128 and this removes the largest VMEM consumer.
        out = jnp.zeros((TH * W, C), jnp.float32)
        for ki in range(3):
            for kj in range(3):
                tap = cols[kj][ki:ki + TH].reshape(TH * W, Cmid)
                out = out + jnp.dot(tap, w2_ref[3 * ki + kj],
                                    preferred_element_type=jnp.float32)

    out = _leaky(out + b2_ref[...])                            # scale already in w2
    if shortcut:
        out = out + x2d.astype(jnp.float32)                    # f32 residual add

    o_ref[0] = out.reshape(TH, W, C).astype(o_ref.dtype)


def _pick_row_tile(H, row_tile):
    """Largest divisor of H that is <= row_tile (avoids the old th=H blow-up)."""
    best = 1
    for d in range(1, min(H, row_tile) + 1):
        if H % d == 0:
            best = d
    if best == 1 and H > 1:
        # TODO(synk): pad H instead of a full-height strip for pathological H.
        return H
    return best


def residual_block(x, w1, s1, b1, w2, s2, b2, *, shortcut=True, row_tile=32):
    """Fused ResidualBlock, NHWC in / NHWC out (dtype passthrough; feed bf16 for
    the bandwidth-bound fast path).

    x  : (N, H, W, C) float32 or bfloat16
    w1 : (C, C//2)            1x1 conv weight
    s1, b1 : (C//2,)          folded BN scale / bias of block1
    w2 : (3, 3, C//2, C)      3x3 conv weight (HWIO)
    s2, b2 : (C,)             folded BN scale / bias of block2
    """
    N, H, W, C = x.shape
    Cmid = w1.shape[1]
    assert w2.shape == (3, 3, Cmid, C)

    th = _pick_row_tile(H, row_tile)
    ni = H // th
    # Note: on v7x, keeping N*ni even balances the two TensorCores.

    use_im2col = Cmid < 128

    # Fold BN scale into the conv weights once; bf16 weights for the MXU,
    # f32 biases for the epilogue.
    w1b = (w1.astype(jnp.float32) * s1.astype(jnp.float32)[None, :]).astype(jnp.bfloat16)
    w2s = w2.astype(jnp.float32) * s2.astype(jnp.float32)[None, None, None, :]
    if use_im2col:
        w2b = w2s.reshape(9 * Cmid, C).astype(jnp.bfloat16)
        w2_spec = pl.BlockSpec((9 * Cmid, C), lambda n, i: (0, 0))
    else:
        w2b = w2s.reshape(9, Cmid, C).astype(jnp.bfloat16)
        w2_spec = pl.BlockSpec((9, Cmid, C), lambda n, i: (0, 0, 0))
    b1r = b1.reshape(1, Cmid).astype(jnp.float32)
    b2r = b2.reshape(1, C).astype(jnp.float32)

    # Rough per-step VMEM budget (lane padding to 128 included) -> explicit limit.
    esize = x.dtype.itemsize
    cpad = max(C, 128)
    mpad = max(Cmid, 128)
    strip = th * W * cpad * esize
    weights = (C * mpad + 9 * Cmid * cpad) * 2 + (mpad + cpad) * 4
    interm = ((th + 2) * W * mpad * (4 + 2)            # h (f32) + hp (bf16)
              + (th * W * 9 * mpad * 2 if use_im2col else 0)   # bf16 im2col patch
              + th * W * cpad * 4                      # f32 accumulator / out
              + 2 * W * cpad * esize)                  # halo landing buffer
    est = 4 * strip + 2 * weights + interm             # 2x double-buffered in+out
    vmem_limit = int(min(max(2 * est, 32 * 1024 * 1024), 64 * 1024 * 1024))

    flops = 2 * N * H * W * Cmid * (C + 9 * C)
    bytes_accessed = int(2 * N * H * W * C * esize + w1b.size * 2 + w2b.size * 2
                         + (Cmid + C) * 4)

    kernel = functools.partial(_residual_block_kernel, shortcut=shortcut,
                               use_im2col=use_im2col)
    return pl.pallas_call(
        kernel,
        out_shape=jax.ShapeDtypeStruct((N, H, W, C), x.dtype),
        grid_spec=pltpu.PrefetchScalarGridSpec(
            num_scalar_prefetch=0,
            grid=(N, ni),
            in_specs=[
                # row strip of x (auto-pipelined, also used for the residual)
                pl.BlockSpec((1, th, W, C), lambda n, i: (n, i, 0, 0)),
                # whole x left in HBM for the 2 halo-row manual DMAs
                pl.BlockSpec(memory_space=pl.ANY),
                # weights / folded BN: constant index_map -> stay resident
                pl.BlockSpec((C, Cmid), lambda n, i: (0, 0)),
                pl.BlockSpec((1, Cmid), lambda n, i: (0, 0)),
                w2_spec,
                pl.BlockSpec((1, C), lambda n, i: (0, 0)),
            ],
            out_specs=pl.BlockSpec((1, th, W, C), lambda n, i: (n, i, 0, 0)),
            scratch_shapes=[
                pltpu.VMEM((2, W, C), x.dtype),      # halo-row landing buffer
                pltpu.SemaphoreType.DMA((2,)),       # one sem per halo row
            ],
        ),
        compiler_params=pltpu.CompilerParams(
            dimension_semantics=("parallel", "parallel"),
            vmem_limit_bytes=vmem_limit),
        cost_estimate=pl.CostEstimate(flops=flops, transcendentals=0,
                                      bytes_accessed=bytes_accessed),
    )(x, x, w1b, b1r, w2b, b2r)


def residual_block_nchw(x_nchw, *params, **kw):
    """PyTorch-layout adapter (NCHW in/out).  Prefer the NHWC entry point to
    avoid full-tensor HBM transpose round-trips around every block."""
    x = jnp.transpose(x_nchw, (0, 2, 3, 1))
    return jnp.transpose(residual_block(x, *params, **kw), (0, 3, 1, 2))


def init_params(key, in_channels, dtype=jnp.float32):
    """Deterministic synthetic params.  Eval-mode BatchNorm is folded into
    per-channel scale/bias: scale = gamma/sqrt(var+eps), bias = beta - mean*scale."""
    Cmid = in_channels // 2
    ks = jax.random.split(key, 10)

    # block1: Conv2d(C, C//2, kernel=1, padding=0, bias=False) + BN
    w1 = jax.random.normal(ks[0], (in_channels, Cmid), dtype) * 0.2
    g1 = 1.0 + 0.1 * jax.random.normal(ks[1], (Cmid,), dtype)
    be1 = 0.1 * jax.random.normal(ks[2], (Cmid,), dtype)
    mu1 = 0.1 * jax.random.normal(ks[3], (Cmid,), dtype)
    var1 = jax.random.uniform(ks[4], (Cmid,), dtype, 0.5, 1.5)

    # block2: Conv2d(C//2, C, kernel=3, padding=1, bias=False) + BN  (HWIO)
    w2 = jax.random.normal(ks[5], (3, 3, Cmid, in_channels), dtype) * 0.2
    g2 = 1.0 + 0.1 * jax.random.normal(ks[6], (in_channels,), dtype)
    be2 = 0.1 * jax.random.normal(ks[7], (in_channels,), dtype)
    mu2 = 0.1 * jax.random.normal(ks[8], (in_channels,), dtype)
    var2 = jax.random.uniform(ks[9], (in_channels,), dtype, 0.5, 1.5)

    s1 = g1 / jnp.sqrt(var1 + BN_EPS)
    b1 = be1 - mu1 * s1
    s2 = g2 / jnp.sqrt(var2 + BN_EPS)
    b2 = be2 - mu2 * s2
    return w1, s1, b1, w2, s2, b2


def reference(x, w1, s1, b1, w2, s2, b2, *, shortcut=True, mimic_kernel=False):
    """Plain-JAX NHWC reference of the module (eval-mode BN).  With
    mimic_kernel=True the BN scales are folded into the weights and the MXU
    inputs (x, folded weights, block1 output) are rounded to bf16 — exactly
    what the kernel feeds the MXU — so a tight tolerance can be used."""
    x = x.astype(jnp.float32)
    C, Cmid = w1.shape
    dn = ("NHWC", "HWIO", "NHWC")
    if mimic_kernel:
        rb = lambda a: a.astype(jnp.bfloat16).astype(jnp.float32)
        w1f = rb(w1 * s1[None, :])
        w2f = rb(w2 * s2[None, None, None, :])
        h = lax.conv_general_dilated(rb(x), w1f.reshape(1, 1, C, Cmid), (1, 1),
                                     "VALID", dimension_numbers=dn,
                                     precision=lax.Precision.HIGHEST)
        h = _leaky(h + b1)
        o = lax.conv_general_dilated(rb(h), w2f, (1, 1), "SAME",
                                     dimension_numbers=dn,
                                     precision=lax.Precision.HIGHEST)
        o = _leaky(o + b2)
    else:
        h = lax.conv_general_dilated(x, w1.reshape(1, 1, C, Cmid), (1, 1),
                                     "VALID", dimension_numbers=dn,
                                     precision=lax.Precision.HIGHEST)
        h = _leaky(h * s1 + b1)
        o = lax.conv_general_dilated(h, w2, (1, 1), "SAME",
                                     dimension_numbers=dn,
                                     precision=lax.Precision.HIGHEST)
        o = _leaky(o * s2 + b2)
    if shortcut:
        o = o + x
    return o


if __name__ == "__main__":
    key = jax.random.PRNGKey(0)
    k_x, k_p, k_x2, k_p2 = jax.random.split(key, 4)

    # ---- Run A: f32 activations, C=16 (Cmid=8 -> single im2col matmul),
    #             row_tile=8 so the halo-DMA path is exercised (ni=2). --------
    N, H, W, C = 2, 16, 16, 16
    x = jax.random.normal(k_x, (N, H, W, C), jnp.float32)
    params = init_params(k_p, C)

    out = jax.block_until_ready(residual_block(x, *params, shortcut=True,
                                               row_tile=8))
    assert out.shape == (N, H, W, C)

    # Tight check vs. a reference mirroring the kernel's bf16 MXU inputs.
    ref_m = reference(x, *params, shortcut=True, mimic_kernel=True)
    err = float(jnp.max(jnp.abs(out.astype(jnp.float32) - ref_m)))
    assert err < 1e-2, f"mimic-bf16 check failed: {err}"

    # Loose check vs. the pure-f32 module math (bf16 quantization only).
    ref_f = reference(x, *params, shortcut=True, mimic_kernel=False)
    rel = float(jnp.linalg.norm(out.astype(jnp.float32) - ref_f)
                / jnp.linalg.norm(ref_f))
    assert rel < 2e-2, f"f32 check failed: {rel}"

    # ---- Run B: bf16 activations in HBM (fast path), C=256 (Cmid=128 ->
    #             nine accumulating dots, no im2col patch), halo exercised. ---
    N2, H2, W2, C2 = 1, 16, 8, 256
    x2 = jax.random.normal(k_x2, (N2, H2, W2, C2), jnp.float32)
    params2 = init_params(k_p2, C2)
    x2b = x2.astype(jnp.bfloat16)

    out2 = jax.block_until_ready(residual_block(x2b, *params2, shortcut=True,
                                                row_tile=8))
    assert out2.shape == (N2, H2, W2, C2) and out2.dtype == jnp.bfloat16

    ref2 = reference(x2b, *params2, shortcut=True, mimic_kernel=False)
    rel2 = float(jnp.linalg.norm(out2.astype(jnp.float32) - ref2)
                 / jnp.linalg.norm(ref2))
    assert rel2 < 3e-2, f"bf16 fast-path check failed: {rel2}"

    print("KERNEL_OK")
</pallas_src>

<mosaic_0001>
module attributes {stable_mosaic.version = 11 : i64} {
  func.func @_residual_block_kernel(%arg0: i32, %arg1: i32, %arg2: memref<1x8x16x16xf32, #tpu.memory_space<vmem>>, %arg3: memref<2x16x16x16xf32, #tpu.memory_space<any>>, %arg4: memref<16x8xbf16, #tpu.memory_space<vmem>>, %arg5: memref<1x8xf32, #tpu.memory_space<vmem>>, %arg6: memref<72x16xbf16, #tpu.memory_space<vmem>>, %arg7: memref<1x16xf32, #tpu.memory_space<vmem>>, %arg8: memref<1x8x16x16xf32, #tpu.memory_space<vmem>>, %arg9: memref<2x16x16xf32, #tpu.memory_space<vmem>>, %arg10: memref<2x!tpu.dma_semaphore, #tpu.memory_space<semaphore_mem>>) attributes {dimension_semantics = [#tpu.dimension_semantics<parallel>, #tpu.dimension_semantics<parallel>], iteration_bounds = array<i64: 2, 2>, scalar_prefetch = 0 : i64, scratch_operands = 2 : i64, tpu.core_type = #tpu.core_type<tc>, window_params = [{transform_indices = @transform_0, window_bounds = array<i64: 1, 8, 16, 16>}, {}, {pipeline_mode = #tpu.pipeline_mode<synchronous>, transform_indices = @transform_2, window_bounds = array<i64: 16, 8>}, {pipeline_mode = #tpu.pipeline_mode<synchronous>, transform_indices = @transform_3, window_bounds = array<i64: 1, 8>}, {pipeline_mode = #tpu.pipeline_mode<synchronous>, transform_indices = @transform_4, window_bounds = array<i64: 72, 16>}, {pipeline_mode = #tpu.pipeline_mode<synchronous>, transform_indices = @transform_5, window_bounds = array<i64: 1, 16>}, {transform_indices = @transform_6, window_bounds = array<i64: 1, 8, 16, 16>}]} {
    %c8_i32 = arith.constant 8 : i32
    %0 = arith.muli %arg1, %c8_i32 : i32
    %c0_i32 = arith.constant 0 : i32
    %1 = arith.cmpi sgt, %arg1, %c0_i32 : i32
    %c1_i32 = arith.constant 1 : i32
    %2 = arith.cmpi slt, %arg1, %c1_i32 : i32
    %3 = arith.extui %1 : i1 to i32
    %c0_i32_0 = arith.constant 0 : i32
    %4 = arith.cmpi ne, %3, %c0_i32_0 : i32
    scf.if %4 {
      %c1_i32_39 = arith.constant 1 : i32
      %85 = arith.subi %0, %c1_i32_39 : i32
      %c0_i32_40 = arith.constant 0 : i32
      %c0_i32_41 = arith.constant 0 : i32
      %c0_i32_42 = arith.constant 0 : i32
      %c0_i32_43 = arith.constant 0 : i32
      %86 = tpu.memref_slice %arg3[%arg0, %85, %c0_i32_42, %c0_i32_43] : memref<2x16x16x16xf32, #tpu.memory_space<any>> -> memref<1x1x16x16xf32, #tpu.memory_space<any>>
      %87 = tpu.memref_squeeze %86 : memref<1x1x16x16xf32, #tpu.memory_space<any>> -> memref<16x16xf32, #tpu.memory_space<any>>
      %c0_i32_44 = arith.constant 0 : i32
      %c0_i32_45 = arith.constant 0 : i32
      %88 = tpu.memref_slice %arg9[%c0_i32_40, %c0_i32_44, %c0_i32_45] : memref<2x16x16xf32, #tpu.memory_space<vmem>> -> memref<1x16x16xf32, #tpu.memory_space<vmem>>
      %89 = tpu.memref_squeeze %88 : memref<1x16x16xf32, #tpu.memory_space<vmem>> -> memref<16x16xf32, #tpu.memory_space<vmem>>
      %90 = tpu.memref_slice %arg10[%c0_i32_41] : memref<2x!tpu.dma_semaphore, #tpu.memory_space<semaphore_mem>> -> memref<1x!tpu.dma_semaphore, #tpu.memory_space<semaphore_mem>>
      %91 = tpu.memref_squeeze %90 : memref<1x!tpu.dma_semaphore, #tpu.memory_space<semaphore_mem>> -> memref<!tpu.dma_semaphore, #tpu.memory_space<semaphore_mem>>
      tpu.enqueue_dma source(%87 : memref<16x16xf32, #tpu.memory_space<any>>) target(%89 : memref<16x16xf32, #tpu.memory_space<vmem>>) target_semaphore(%91 : memref<!tpu.dma_semaphore, #tpu.memory_space<semaphore_mem>>)
    } else {
    }
    %true = arith.constant true
    %5 = arith.xori %1, %true : i1
    %6 = arith.extui %5 : i1 to i32
    %c0_i32_1 = arith.constant 0 : i32
    %7 = arith.cmpi ne, %6, %c0_i32_1 : i32
    scf.if %7 {
      %cst_39 = arith.constant 0.000000e+00 : f32
      %85 = vector.broadcast %cst_39 : f32 to vector<16x16xf32>
      %c0_40 = arith.constant 0 : index
      %c0_41 = arith.constant 0 : index
      %c0_42 = arith.constant 0 : index
      %86 = vector.load %arg9[%c0_40, %c0_41, %c0_42] : memref<2x16x16xf32, #tpu.memory_space<vmem>>, vector<1x16x16xf32>
      %87 = vector.shape_cast %86 : vector<1x16x16xf32> to vector<16x16xf32>
      %88 = vector.shape_cast %85 : vector<16x16xf32> to vector<1x16x16xf32>
      tpu.vector_store %arg9[%c0_40, %c0_41, %c0_42], %88 {strides = array<i32>} : memref<2x16x16xf32, #tpu.memory_space<vmem>>, vector<1x16x16xf32>,
    } else {
    }
    %8 = arith.extui %2 : i1 to i32
    %c0_i32_2 = arith.constant 0 : i32
    %9 = arith.cmpi ne, %8, %c0_i32_2 : i32
    scf.if %9 {
      %c8_i32_39 = arith.constant 8 : i32
      %85 = arith.addi %0, %c8_i32_39 : i32
      %c1_i32_40 = arith.constant 1 : i32
      %c1_i32_41 = arith.constant 1 : i32
      %c0_i32_42 = arith.constant 0 : i32
      %c0_i32_43 = arith.constant 0 : i32
      %86 = tpu.memref_slice %arg3[%arg0, %85, %c0_i32_42, %c0_i32_43] : memref<2x16x16x16xf32, #tpu.memory_space<any>> -> memref<1x1x16x16xf32, #tpu.memory_space<any>>
      %87 = tpu.memref_squeeze %86 : memref<1x1x16x16xf32, #tpu.memory_space<any>> -> memref<16x16xf32, #tpu.memory_space<any>>
      %c0_i32_44 = arith.constant 0 : i32
      %c0_i32_45 = arith.constant 0 : i32
      %88 = tpu.memref_slice %arg9[%c1_i32_40, %c0_i32_44, %c0_i32_45] : memref<2x16x16xf32, #tpu.memory_space<vmem>> -> memref<1x16x16xf32, #tpu.memory_space<vmem>>
      %89 = tpu.memref_squeeze %88 : memref<1x16x16xf32, #tpu.memory_space<vmem>> -> memref<16x16xf32, #tpu.memory_space<vmem>>
      %90 = tpu.memref_slice %arg10[%c1_i32_41] : memref<2x!tpu.dma_semaphore, #tpu.memory_space<semaphore_mem>> -> memref<1x!tpu.dma_semaphore, #tpu.memory_space<semaphore_mem>>
      %91 = tpu.memref_squeeze %90 : memref<1x!tpu.dma_semaphore, #tpu.memory_space<semaphore_mem>> -> memref<!tpu.dma_semaphore, #tpu.memory_space<semaphore_mem>>
      tpu.enqueue_dma source(%87 : memref<16x16xf32, #tpu.memory_space<any>>) target(%89 : memref<16x16xf32, #tpu.memory_space<vmem>>) target_semaphore(%91 : memref<!tpu.dma_semaphore, #tpu.memory_space<semaphore_mem>>)
    } else {
    }
    %true_3 = arith.constant true
    %10 = arith.xori %2, %true_3 : i1
    %11 = arith.extui %10 : i1 to i32
    %c0_i32_4 = arith.constant 0 : i32
    %12 = arith.cmpi ne, %11, %c0_i32_4 : i32
    scf.if %12 {
      %cst_39 = arith.constant 0.000000e+00 : f32
      %85 = vector.broadcast %cst_39 : f32 to vector<16x16xf32>
      %c1 = arith.constant 1 : index
      %c0_40 = arith.constant 0 : index
      %c0_41 = arith.constant 0 : index
      %86 = vector.load %arg9[%c1, %c0_40, %c0_41] : memref<2x16x16xf32, #tpu.memory_space<vmem>>, vector<1x16x16xf32>
      %87 = vector.shape_cast %86 : vector<1x16x16xf32> to vector<16x16xf32>
      %88 = vector.shape_cast %85 : vector<16x16xf32> to vector<1x16x16xf32>
      tpu.vector_store %arg9[%c1, %c0_40, %c0_41], %88 {strides = array<i32>} : memref<2x16x16xf32, #tpu.memory_space<vmem>>, vector<1x16x16xf32>,
    } else {
    }
    %c0 = arith.constant 0 : index
    %c0_5 = arith.constant 0 : index
    %c0_6 = arith.constant 0 : index
    %c0_7 = arith.constant 0 : index
    %13 = vector.load %arg2[%c0, %c0_5, %c0_6, %c0_7] : memref<1x8x16x16xf32, #tpu.memory_space<vmem>>, vector<1x8x16x16xf32>
    %14 = vector.shape_cast %13 : vector<1x8x16x16xf32> to vector<8x16x16xf32>
    %15 = vector.shape_cast %14 : vector<8x16x16xf32> to vector<128x16xf32>
    %16 = arith.truncf %15 : vector<128x16xf32> to vector<128x16xbf16>
    %c0_8 = arith.constant 0 : index
    %c0_9 = arith.constant 0 : index
    %17 = vector.load %arg4[%c0_8, %c0_9] : memref<16x8xbf16, #tpu.memory_space<vmem>>, vector<16x8xbf16>
    %cst = arith.constant dense<0.000000e+00> : vector<128x8xf32>
    %18 = tpu.matmul %16, %17, %cst {dimension_numbers = #tpu.dot_dimension_numbers<[1], [0], [0], [1], [0, 0, 1, 1], [], []>} : vector<128x16xbf16>, vector<16x8xbf16>, vector<128x8xf32> -> vector<128x8xf32>
    %c0_10 = arith.constant 0 : index
    %c0_11 = arith.constant 0 : index
    %19 = vector.load %arg5[%c0_10, %c0_11] : memref<1x8xf32, #tpu.memory_space<vmem>>, vector<1x8xf32>
    %20 = vector.broadcast %19 : vector<1x8xf32> to vector<128x8xf32>
    %21 = arith.addf %18, %20 : vector<128x8xf32>
    %cst_12 = arith.constant 0.000000e+00 : f32
    %22 = vector.broadcast %cst_12 : f32 to vector<128x8xf32>
    %23 = arith.cmpf ogt, %21, %22 : vector<128x8xf32>
    %cst_13 = arith.constant 1.000000e-01 : f32
    %24 = vector.broadcast %cst_13 : f32 to vector<128x8xf32>
    %25 = arith.mulf %24, %21 : vector<128x8xf32>
    %26 = arith.select %23, %21, %25 : vector<128x8xi1>, vector<128x8xf32>
    %27 = vector.shape_cast %26 : vector<128x8xf32> to vector<8x16x8xf32>
    %28 = arith.truncf %27 : vector<8x16x8xf32> to vector<8x16x8xbf16>
    %29 = arith.extui %1 : i1 to i32
    %c0_i32_14 = arith.constant 0 : i32
    %30 = arith.cmpi ne, %29, %c0_i32_14 : i32
    scf.if %30 {
      %c1_i32_39 = arith.constant 1 : i32
      %85 = arith.subi %0, %c1_i32_39 : i32
      %c0_i32_40 = arith.constant 0 : i32
      %c0_i32_41 = arith.constant 0 : i32
      %c0_i32_42 = arith.constant 0 : i32
      %c0_i32_43 = arith.constant 0 : i32
      %86 = tpu.memref_slice %arg3[%arg0, %85, %c0_i32_42, %c0_i32_43] : memref<2x16x16x16xf32, #tpu.memory_space<any>> -> memref<1x1x16x16xf32, #tpu.memory_space<any>>
      %87 = tpu.memref_squeeze %86 : memref<1x1x16x16xf32, #tpu.memory_space<any>> -> memref<16x16xf32, #tpu.memory_space<any>>
      %c0_i32_44 = arith.constant 0 : i32
      %c0_i32_45 = arith.constant 0 : i32
      %88 = tpu.memref_slice %arg9[%c0_i32_40, %c0_i32_44, %c0_i32_45] : memref<2x16x16xf32, #tpu.memory_space<vmem>> -> memref<1x16x16xf32, #tpu.memory_space<vmem>>
      %89 = tpu.memref_squeeze %88 : memref<1x16x16xf32, #tpu.memory_space<vmem>> -> memref<16x16xf32, #tpu.memory_space<vmem>>
      %90 = tpu.memref_slice %arg10[%c0_i32_41] : memref<2x!tpu.dma_semaphore, #tpu.memory_space<semaphore_mem>> -> memref<1x!tpu.dma_semaphore, #tpu.memory_space<semaphore_mem>>
      %91 = tpu.memref_squeeze %90 : memref<1x!tpu.dma_semaphore, #tpu.memory_space<semaphore_mem>> -> memref<!tpu.dma_semaphore, #tpu.memory_space<semaphore_mem>>
      tpu.wait_dma2 semaphore(%91 : memref<!tpu.dma_semaphore, #tpu.memory_space<semaphore_mem>>) src(%87 : memref<16x16xf32, #tpu.memory_space<any>>) dst(%89 : memref<16x16xf32, #tpu.memory_space<vmem>>)
    } else {
    }
    %31 = arith.extui %2 : i1 to i32
    %c0_i32_15 = arith.constant 0 : i32
    %32 = arith.cmpi ne, %31, %c0_i32_15 : i32
    scf.if %32 {
      %c8_i32_39 = arith.constant 8 : i32
      %85 = arith.addi %0, %c8_i32_39 : i32
      %c1_i32_40 = arith.constant 1 : i32
      %c1_i32_41 = arith.constant 1 : i32
      %c0_i32_42 = arith.constant 0 : i32
      %c0_i32_43 = arith.constant 0 : i32
      %86 = tpu.memref_slice %arg3[%arg0, %85, %c0_i32_42, %c0_i32_43] : memref<2x16x16x16xf32, #tpu.memory_space<any>> -> memref<1x1x16x16xf32, #tpu.memory_space<any>>
      %87 = tpu.memref_squeeze %86 : memref<1x1x16x16xf32, #tpu.memory_space<any>> -> memref<16x16xf32, #tpu.memory_space<any>>
      %c0_i32_44 = arith.constant 0 : i32
      %c0_i32_45 = arith.constant 0 : i32
      %88 = tpu.memref_slice %arg9[%c1_i32_40, %c0_i32_44, %c0_i32_45] : memref<2x16x16xf32, #tpu.memory_space<vmem>> -> memref<1x16x16xf32, #tpu.memory_space<vmem>>
      %89 = tpu.memref_squeeze %88 : memref<1x16x16xf32, #tpu.memory_space<vmem>> -> memref<16x16xf32, #tpu.memory_space<vmem>>
      %90 = tpu.memref_slice %arg10[%c1_i32_41] : memref<2x!tpu.dma_semaphore, #tpu.memory_space<semaphore_mem>> -> memref<1x!tpu.dma_semaphore, #tpu.memory_space<semaphore_mem>>
      %91 = tpu.memref_squeeze %90 : memref<1x!tpu.dma_semaphore, #tpu.memory_space<semaphore_mem>> -> memref<!tpu.dma_semaphore, #tpu.memory_space<semaphore_mem>>
      tpu.wait_dma2 semaphore(%91 : memref<!tpu.dma_semaphore, #tpu.memory_space<semaphore_mem>>) src(%87 : memref<16x16xf32, #tpu.memory_space<any>>) dst(%89 : memref<16x16xf32, #tpu.memory_space<vmem>>)
    } else {
    }
    %c0_16 = arith.constant 0 : index
    %c0_17 = arith.constant 0 : index
    %c0_18 = arith.constant 0 : index
    %33 = vector.load %arg9[%c0_16, %c0_17, %c0_18] : memref<2x16x16xf32, #tpu.memory_space<vmem>>, vector<2x16x16xf32>
    %34 = vector.shape_cast %33 : vector<2x16x16xf32> to vector<32x16xf32>
    %35 = arith.truncf %34 : vector<32x16xf32> to vector<32x16xbf16>
    %c0_19 = arith.constant 0 : index
    %c0_20 = arith.constant 0 : index
    %36 = vector.load %arg4[%c0_19, %c0_20] : memref<16x8xbf16, #tpu.memory_space<vmem>>, vector<16x8xbf16>
    %cst_21 = arith.constant dense<0.000000e+00> : vector<32x8xf32>
    %37 = tpu.matmul %35, %36, %cst_21 {dimension_numbers = #tpu.dot_dimension_numbers<[1], [0], [0], [1], [0, 0, 1, 1], [], []>} : vector<32x16xbf16>, vector<16x8xbf16>, vector<32x8xf32> -> vector<32x8xf32>
    %c0_22 = arith.constant 0 : index
    %c0_23 = arith.constant 0 : index
    %38 = vector.load %arg5[%c0_22, %c0_23] : memref<1x8xf32, #tpu.memory_space<vmem>>, vector<1x8xf32>
    %39 = vector.broadcast %38 : vector<1x8xf32> to vector<32x8xf32>
    %40 = arith.addf %37, %39 : vector<32x8xf32>
    %cst_24 = arith.constant 0.000000e+00 : f32
    %41 = vector.broadcast %cst_24 : f32 to vector<32x8xf32>
    %42 = arith.cmpf ogt, %40, %41 : vector<32x8xf32>
    %cst_25 = arith.constant 1.000000e-01 : f32
    %43 = vector.broadcast %cst_25 : f32 to vector<32x8xf32>
    %44 = arith.mulf %43, %40 : vector<32x8xf32>
    %45 = arith.select %42, %40, %44 : vector<32x8xi1>, vector<32x8xf32>
    %46 = arith.truncf %45 : vector<32x8xf32> to vector<32x8xbf16>
    %47 = vector.shape_cast %46 : vector<32x8xbf16> to vector<2x16x8xbf16>
    %cst_26 = arith.constant 0.000000e+00 : bf16
    %48 = vector.broadcast %cst_26 : bf16 to vector<1x16x8xbf16>
    %49 = vector.extract_strided_slice %47 {offsets = [0, 0, 0], sizes = [1, 16, 8], strides = [1, 1, 1]} : vector<2x16x8xbf16> to vector<1x16x8xbf16>
    %50 = arith.select %1, %49, %48 : vector<1x16x8xbf16>
    %51 = vector.extract_strided_slice %47 {offsets = [1, 0, 0], sizes = [1, 16, 8], strides = [1, 1, 1]} : vector<2x16x8xbf16> to vector<1x16x8xbf16>
    %52 = arith.select %2, %51, %48 : vector<1x16x8xbf16>
    %53 = tpu.concatenate %50, %28, %52 in 0 : vector<1x16x8xbf16>, vector<8x16x8xbf16>, vector<1x16x8xbf16> -> vector<10x16x8xbf16>
    %cst_27 = arith.constant 0.000000e+00 : bf16
    %54 = vector.broadcast %cst_27 : bf16 to vector<10x1x8xbf16>
    %55 = vector.extract_strided_slice %53 {offsets = [0, 0, 0], sizes = [10, 15, 8], strides = [1, 1, 1]} : vector<10x16x8xbf16> to vector<10x15x8xbf16>
    %56 = tpu.concatenate %54, %55 in 1 : vector<10x1x8xbf16>, vector<10x15x8xbf16> -> vector<10x16x8xbf16>
    %57 = vector.extract_strided_slice %53 {offsets = [0, 1, 0], sizes = [10, 15, 8], strides = [1, 1, 1]} : vector<10x16x8xbf16> to vector<10x15x8xbf16>
    %58 = tpu.concatenate %57, %54 in 1 : vector<10x15x8xbf16>, vector<10x1x8xbf16> -> vector<10x16x8xbf16>
    %59 = vector.extract_strided_slice %56 {offsets = [0, 0, 0], sizes = [8, 16, 8], strides = [1, 1, 1]} : vector<10x16x8xbf16> to vector<8x16x8xbf16>
    %60 = vector.extract_strided_slice %53 {offsets = [0, 0, 0], sizes = [8, 16, 8], strides = [1, 1, 1]} : vector<10x16x8xbf16> to vector<8x16x8xbf16>
    %61 = vector.extract_strided_slice %58 {offsets = [0, 0, 0], sizes = [8, 16, 8], strides = [1, 1, 1]} : vector<10x16x8xbf16> to vector<8x16x8xbf16>
    %62 = vector.extract_strided_slice %56 {offsets = [1, 0, 0], sizes = [8, 16, 8], strides = [1, 1, 1]} : vector<10x16x8xbf16> to vector<8x16x8xbf16>
    %63 = vector.extract_strided_slice %53 {offsets = [1, 0, 0], sizes = [8, 16, 8], strides = [1, 1, 1]} : vector<10x16x8xbf16> to vector<8x16x8xbf16>
    %64 = vector.extract_strided_slice %58 {offsets = [1, 0, 0], sizes = [8, 16, 8], strides = [1, 1, 1]} : vector<10x16x8xbf16> to vector<8x16x8xbf16>
    %65 = vector.extract_strided_slice %56 {offsets = [2, 0, 0], sizes = [8, 16, 8], strides = [1, 1, 1]} : vector<10x16x8xbf16> to vector<8x16x8xbf16>
    %66 = vector.extract_strided_slice %53 {offsets = [2, 0, 0], sizes = [8, 16, 8], strides = [1, 1, 1]} : vector<10x16x8xbf16> to vector<8x16x8xbf16>
    %67 = vector.extract_strided_slice %58 {offsets = [2, 0, 0], sizes = [8, 16, 8], strides = [1, 1, 1]} : vector<10x16x8xbf16> to vector<8x16x8xbf16>
    %68 = tpu.concatenate %59, %60, %61, %62, %63, %64, %65, %66, %67 in 2 : vector<8x16x8xbf16>, vector<8x16x8xbf16>, vector<8x16x8xbf16>, vector<8x16x8xbf16>, vector<8x16x8xbf16>, vector<8x16x8xbf16>, vector<8x16x8xbf16>, vector<8x16x8xbf16>, vector<8x16x8xbf16> -> vector<8x16x72xbf16>
    %69 = vector.shape_cast %68 : vector<8x16x72xbf16> to vector<128x72xbf16>
    %c0_28 = arith.constant 0 : index
    %c0_29 = arith.constant 0 : index
    %70 = vector.load %arg6[%c0_28, %c0_29] : memref<72x16xbf16, #tpu.memory_space<vmem>>, vector<72x16xbf16>
    %cst_30 = arith.constant dense<0.000000e+00> : vector<128x16xf32>
    %71 = tpu.matmul %69, %70, %cst_30 {dimension_numbers = #tpu.dot_dimension_numbers<[1], [0], [0], [1], [0, 0, 1, 1], [], []>} : vector<128x72xbf16>, vector<72x16xbf16>, vector<128x16xf32> -> vector<128x16xf32>
    %c0_31 = arith.constant 0 : index
    %c0_32 = arith.constant 0 : index
    %72 = vector.load %arg7[%c0_31, %c0_32] : memref<1x16xf32, #tpu.memory_space<vmem>>, vector<1x16xf32>
    %73 = vector.broadcast %72 : vector<1x16xf32> to vector<128x16xf32>
    %74 = arith.addf %71, %73 : vector<128x16xf32>
    %cst_33 = arith.constant 0.000000e+00 : f32
    %75 = vector.broadcast %cst_33 : f32 to vector<128x16xf32>
    %76 = arith.cmpf ogt, %74, %75 : vector<128x16xf32>
    %cst_34 = arith.constant 1.000000e-01 : f32
    %77 = vector.broadcast %cst_34 : f32 to vector<128x16xf32>
    %78 = arith.mulf %77, %74 : vector<128x16xf32>
    %79 = arith.select %76, %74, %78 : vector<128x16xi1>, vector<128x16xf32>
    %80 = arith.addf %79, %15 : vector<128x16xf32>
    %81 = vector.shape_cast %80 : vector<128x16xf32> to vector<8x16x16xf32>
    %c0_35 = arith.constant 0 : index
    %c0_36 = arith.constant 0 : index
    %c0_37 = arith.constant 0 : index
    %c0_38 = arith.constant 0 : index
    %82 = vector.load %arg8[%c0_35, %c0_36, %c0_37, %c0_38] : memref<1x8x16x16xf32, #tpu.memory_space<vmem>>, vector<1x8x16x16xf32>
    %83 = vector.shape_cast %82 : vector<1x8x16x16xf32> to vector<8x16x16xf32>
    %84 = vector.shape_cast %81 : vector<8x16x16xf32> to vector<1x8x16x16xf32>
    tpu.vector_store %arg8[%c0_35, %c0_36, %c0_37, %c0_38], %84 {strides = array<i32>} : memref<1x8x16x16xf32, #tpu.memory_space<vmem>>, vector<1x8x16x16xf32>,
    return
  }
  func.func @transform_0(%arg0: i32, %arg1: i32) -> (i32, i32, i32, i32) {
    %c0_i32 = arith.constant 0 : i32
    %c0_i32_0 = arith.constant 0 : i32
    %c0_i32_1 = arith.constant 0 : i32
    return %arg0, %arg1, %c0_i32, %c0_i32_0 : i32, i32, i32, i32
  }
  func.func @transform_2(%arg0: i32, %arg1: i32) -> (i32, i32) {
    %c0_i32 = arith.constant 0 : i32
    %c0_i32_0 = arith.constant 0 : i32
    %c0_i32_1 = arith.constant 0 : i32
    return %c0_i32, %c0_i32_0 : i32, i32
  }
  func.func @transform_3(%arg0: i32, %arg1: i32) -> (i32, i32) {
    %c0_i32 = arith.constant 0 : i32
    %c0_i32_0 = arith.constant 0 : i32
    %c0_i32_1 = arith.constant 0 : i32
    return %c0_i32, %c0_i32_0 : i32, i32
  }
  func.func @transform_4(%arg0: i32, %arg1: i32) -> (i32, i32) {
    %c0_i32 = arith.constant 0 : i32
    %c0_i32_0 = arith.constant 0 : i32
    %c0_i32_1 = arith.constant 0 : i32
    return %c0_i32, %c0_i32_0 : i32, i32
  }
  func.func @transform_5(%arg0: i32, %arg1: i32) -> (i32, i32) {
    %c0_i32 = arith.constant 0 : i32
    %c0_i32_0 = arith.constant 0 : i32
    %c0_i32_1 = arith.constant 0 : i32
    return %c0_i32, %c0_i32_0 : i32, i32
  }
  func.func @transform_6(%arg0: i32, %arg1: i32) -> (i32, i32, i32, i32) {
    %c0_i32 = arith.constant 0 : i32
    %c0_i32_0 = arith.constant 0 : i32
    %c0_i32_1 = arith.constant 0 : i32
    return %arg0, %arg1, %c0_i32, %c0_i32_0 : i32, i32, i32, i32
  }
}

</mosaic_0001>

<llo_original>
// kernel: tpu_custom_call.1
$region0: #{tpu_custom_call.1}
  #allocation0 [shape = 'u32[]', space=smem, size = 0x4, offset = 0x4, fixed_abs, tag = 'smem constant byte address 0x4 - core index']
  #allocation1 [shape = 'u32[144,128]{1,0:T(1,128)}', space=vmem, size = 0x12000, scoped, tag = 'internal scratch']
  #allocation2 [shape = 'f32[2,16,16]{2,1,0:T(8,128)}', space=vmem, size = 0x4000, scoped, tag = 'scratch operand']
  #allocation3 [shape = 's32[2]{0}', space=sflag, size = 0x8, scoped, tag = 'scratch operand']
  #allocation8 [shape = 's32[]', space=sflag, size = 0x4, offset = 0, fixed_abs, tag = 'sflag constant byte address 0x0 - dummy sync flag']
  #allocation9 [shape = 's32[]', space=sflag, size = 0x4, offset = 0, fixed_abs, tag = 'sflag constant byte address 0x0 - dummy sync flag']
  #allocation10 [shape = 'u32[]', space=smem, size = 0x4, offset = 0x44, fixed_abs, tag = 'smem constant byte address 0x44 - assertion arg 0']
  #allocation11 [shape = 'u32[]', space=smem, size = 0x4, offset = 0x48, fixed_abs, tag = 'smem constant byte address 0x48 - assertion arg 1']
  #allocation12 [shape = 's32[]', space=sflag, size = 0x4, offset = 0, fixed_abs, tag = 'sflag constant byte address 0x0 - dummy sync flag']
  #allocation13 [shape = 's32[]', space=sflag, size = 0x4, offset = 0, fixed_abs, tag = 'sflag constant byte address 0x0 - dummy sync flag']
  %s0 = inlined_call_operand.hbm [shape: f32[2,16,16,16], index: 0, kind: input, shape index: {}]
  %s1 = inlined_call_operand.hbm [shape: f32[2,16,16,16], index: 1, kind: input, shape index: {}]
  %s2 = inlined_call_operand.vmem [shape: bf16[16,8], index: 2, kind: input, shape index: {}]
  %s3 = inlined_call_operand.vmem [shape: f32[1,8], index: 3, kind: input, shape index: {}]
  %s4 = inlined_call_operand.vmem [shape: bf16[72,16], index: 4, kind: input, shape index: {}]
  %s5 = inlined_call_operand.vmem [shape: f32[1,16], index: 5, kind: input, shape index: {}]
  %s6 = inlined_call_operand.hbm [shape: f32[2,16,16,16], index: 6, kind: output, shape index: {}]
  %s7 = sld [smem:[#allocation0]]
  $region89: #{tpu_custom_call.1} parent=0
    _
  %s9 = ssub.s32 1, %s7
  %s10 = scalar_select 0, %s9, %s7
  $region1: #{tpu_custom_call.1} parent=0
    #allocation4 [shape = 'u8[131072]{0}', space=vmem, size = 0x20000, scoped, tag = 'input window, operand 0']
    #allocation5 [shape = 's32[2]{0}', space=sflag, size = 0x8, scoped, tag = 'scoped memory for tpu_custom_call.1']
    #allocation6 [shape = 's32[2]{0}', space=sflag, size = 0x8, scoped, tag = 'scoped memory for tpu_custom_call.1']
    #allocation7 [shape = 'u8[131072]{0}', space=vmem, size = 0x20000, scoped, tag = 'output window, operand 0']
    %11 = vsyncpa [#allocation5], 0
    %s12 = scalar_lea.sflag [#allocation5], 1
    %13 = vsyncpa %s12, 0
    %14 = vsyncpa [#allocation6], 0
    %s15 = scalar_lea.sflag [#allocation6], 1
    %16 = vsyncpa %s15, 0
    loop: start=0, step=1, limit=6
    $region2: #{tpu_custom_call.1} parent=1 // loop_pre_header
      _
    $region3: #{tpu_custom_call.1} parent=1 // loop_header
      %s18 = sphi 0, %s22
      %p19 = scmp.ge.s32.totalorder %s18, 6
      %s25 = sphi 0, %s37
      %s26 = sphi 0, %s33
      %s27 = sphi 0, %s25
      %s28 = sphi 0, %s26
      %s29 = sphi 0, %s27
      %s30 = sphi 0, %s28
      %s42 = sphi 0, %s44
      %s45 = sphi 0, %s42
      %s46 = sphi 0, %s45
      %s62 = sphi 0, %s46
      %s66 = sphi 0, %s66
      %s68 = sphi 0, %s66
      %s69 = sphi 0, %s68
      %s83 = sphi 0, %s69
      %s87 = sphi 0, %s87
      %s89 = sphi 0, %s87
      %s90 = sphi 0, %s89
      %s104 = sphi 0, %s90
      %s108 = sphi 0, %s108
      %s110 = sphi 0, %s108
      %s111 = sphi 0, %s110
      %s125 = sphi 0, %s111
      %s129 = sphi 0, %s129
      %s131 = sphi 0, %s129
      %s132 = sphi 0, %s131
      %s146 = sphi 0, %s132
      %s154 = sphi 0, %s156
      %s157 = sphi 0, %s154
      %s158 = sphi 0, %s157
      %s174 = sphi 0, %s158
    $region4: #{tpu_custom_call.1} parent=1 // loop_header_branch
      %21 = sbr.rel (%p19) target = $region8
    $region5: #{tpu_custom_call.1} parent=1 // loop_body
      %s23 = ssub.s32 %s18, 1
      %s24 = ssub.s32 %s18, 2
      %s31 = sadd.s32 1, %s26
      %p32 = scmp.ge.s32.totalorder %s31, 2
      %s33 = scalar_select %p32, 0, %s31
      %s34 = sadd.s32 1, %s25
      %s35 = scalar_select %p32, %s34, %s25
      %p36 = scmp.ge.s32.totalorder %s35, 2
      %s37 = scalar_select %p36, 0, %s35
      %s38 = ssub.s32 %s25, %s37
      %s39 = ssub.s32 %s26, %s33
      %s40 = sor.u32 %s38, %s39
      %p41 = scmp.eq.s32.totalorder %s40, 0
      %s43 = sadd.s32 %s42, 1
      %s44 = scalar_select %p41, %s42, %s43
      %p47 = pneg %p41
      %p48 = scmp.eq.s32.totalorder %s18, 3
      %p49 = por %p47, %p48
      %p50 = scmp.ne.s32.totalorder %s42, %s45
      %p51 = scmp.eq.s32.totalorder %s18, 0
      %p52 = por %p50, %p51
      %p53 = scmp.ne.s32.totalorder %s42, %s45
      %p54 = scmp.eq.s32.totalorder %s23, 3
      %p55 = por %p53, %p54
      %p56 = scmp.ne.s32.totalorder %s45, %s46
      %p57 = scmp.eq.s32.totalorder %s23, 0
      %p58 = por %p56, %p57
      %p59 = scmp.ne.s32.totalorder %s45, %s46
      %p60 = scmp.eq.s32.totalorder %s24, 3
      %p61 = por %p59, %p60
      %p63 = scmp.ne.s32.totalorder %s46, %s62
      %p64 = scmp.eq.s32.totalorder %s24, 0
      %p65 = por %p63, %p64
      %s67 = sadd.s32 %s66, 1
      %p70 = scmp.eq.s32.totalorder %s18, 3
      %p71 = scmp.ne.s32.totalorder %s66, %s68
      %p72 = scmp.eq.s32.totalorder %s18, 0
      %p73 = por %p71, %p72
      %p74 = scmp.ne.s32.totalorder %s66, %s68
      %p75 = scmp.eq.s32.totalorder %s23, 3
      %p76 = por %p74, %p75
      %p77 = scmp.ne.s32.totalorder %s68, %s69
      %p78 = scmp.eq.s32.totalorder %s23, 0
      %p79 = por %p77, %p78
      %p80 = scmp.ne.s32.totalorder %s68, %s69
      %p81 = scmp.eq.s32.totalorder %s24, 3
      %p82 = por %p80, %p81
      %p84 = scmp.ne.s32.totalorder %s69, %s83
      %p85 = scmp.eq.s32.totalorder %s24, 0
      %p86 = por %p84, %p85
      %s88 = sadd.s32 %s87, 1
      %p91 = scmp.eq.s32.totalorder %s18, 3
      %p92 = scmp.ne.s32.totalorder %s87, %s89
      %p93 = scmp.eq.s32.totalorder %s18, 0
      %p94 = por %p92, %p93
      %p95 = scmp.ne.s32.totalorder %s87, %s89
      %p96 = scmp.eq.s32.totalorder %s23, 3
      %p97 = por %p95, %p96
      %p98 = scmp.ne.s32.totalorder %s89, %s90
      %p99 = scmp.eq.s32.totalorder %s23, 0
      %p100 = por %p98, %p99
      %p101 = scmp.ne.s32.totalorder %s89, %s90
      %p102 = scmp.eq.s32.totalorder %s24, 3
      %p103 = por %p101, %p102
      %p105 = scmp.ne.s32.totalorder %s90, %s104
      %p106 = scmp.eq.s32.totalorder %s24, 0
      %p107 = por %p105, %p106
      %s109 = sadd.s32 %s108, 1
      %p112 = scmp.eq.s32.totalorder %s18, 3
      %p113 = scmp.ne.s32.totalorder %s108, %s110
      %p114 = scmp.eq.s32.totalorder %s18, 0
      %p115 = por %p113, %p114
      %p116 = scmp.ne.s32.totalorder %s108, %s110
      %p117 = scmp.eq.s32.totalorder %s23, 3
      %p118 = por %p116, %p117
      %p119 = scmp.ne.s32.totalorder %s110, %s111
      %p120 = scmp.eq.s32.totalorder %s23, 0
      %p121 = por %p119, %p120
      %p122 = scmp.ne.s32.totalorder %s110, %s111
      %p123 = scmp.eq.s32.totalorder %s24, 3
      %p124 = por %p122, %p123
      %p126 = scmp.ne.s32.totalorder %s111, %s125
      %p127 = scmp.eq.s32.totalorder %s24, 0
      %p128 = por %p126, %p127
      %s130 = sadd.s32 %s129, 1
      %p133 = scmp.eq.s32.totalorder %s18, 3
      %p134 = scmp.ne.s32.totalorder %s129, %s131
      %p135 = scmp.eq.s32.totalorder %s18, 0
      %p136 = por %p134, %p135
      %p137 = scmp.ne.s32.totalorder %s129, %s131
      %p138 = scmp.eq.s32.totalorder %s23, 3
      %p139 = por %p137, %p138
      %p140 = scmp.ne.s32.totalorder %s131, %s132
      %p141 = scmp.eq.s32.totalorder %s23, 0
      %p142 = por %p140, %p141
      %p143 = scmp.ne.s32.totalorder %s131, %s132
      %p144 = scmp.eq.s32.totalorder %s24, 3
      %p145 = por %p143, %p144
      %p147 = scmp.ne.s32.totalorder %s132, %s146
      %p148 = scmp.eq.s32.totalorder %s24, 0
      %p149 = por %p147, %p148
      %s150 = ssub.s32 %s25, %s37
      %s151 = ssub.s32 %s26, %s33
      %s152 = sor.u32 %s150, %s151
      %p153 = scmp.eq.s32.totalorder %s152, 0
      %s155 = sadd.s32 %s154, 1
      %s156 = scalar_select %p153, %s154, %s155
      %p159 = pneg %p153
      %p160 = scmp.eq.s32.totalorder %s18, 3
      %p161 = por %p159, %p160
      %p162 = scmp.ne.s32.totalorder %s154, %s157
      %p163 = scmp.eq.s32.totalorder %s18, 0
      %p164 = por %p162, %p163
      %p165 = scmp.ne.s32.totalorder %s154, %s157
      %p166 = scmp.eq.s32.totalorder %s23, 3
      %p167 = por %p165, %p166
      %p168 = scmp.ne.s32.totalorder %s157, %s158
      %p169 = scmp.eq.s32.totalorder %s23, 0
      %p170 = por %p168, %p169
      %p171 = scmp.ne.s32.totalorder %s157, %s158
      %p172 = scmp.eq.s32.totalorder %s24, 3
      %p173 = por %p171, %p172
      %p175 = scmp.ne.s32.totalorder %s158, %s174
      %p176 = scmp.eq.s32.totalorder %s24, 0
      %p177 = por %p175, %p176
      %p178 = scmp.le.s32.totalorder 1, %s18
      %p179 = scmp.lt.s32.totalorder %s18, 5
      %p180 = pnand %p178, %p179
      %p181 = pneg %p180
      // Predicated region
      $region9: #{tpu_custom_call.1} parent=5 // pred_check
        _
      $region10: #{tpu_custom_call.1} parent=5 // pred_check_branch
        %183 = sbr.rel (%p180) target = $region12
      $region11: #{tpu_custom_call.1} parent=5 // pred_region
        %s184 = ssub.s32 %s18, 1
        // Predicated region
        $region13: #{tpu_custom_call.1} parent=11 // pred_check
          %p185 = pneg %p79
        $region14: #{tpu_custom_call.1} parent=11 // pred_check_branch
          %187 = sbr.rel (%p185) target = $region16
        $region15: #{tpu_custom_call.1} parent=11 // pred_region
          _
        $region16: #{tpu_custom_call.1} parent=11 // pred_fallthru
          _
        // Predicated region
        $region17: #{tpu_custom_call.1} parent=11 // pred_check
          %p188 = pneg %p100
        $region18: #{tpu_custom_call.1} parent=11 // pred_check_branch
          %190 = sbr.rel (%p188) target = $region20
        $region19: #{tpu_custom_call.1} parent=11 // pred_region
          _
        $region20: #{tpu_custom_call.1} parent=11 // pred_fallthru
          _
        // Predicated region
        $region21: #{tpu_custom_call.1} parent=11 // pred_check
          %p191 = pneg %p121
        $region22: #{tpu_custom_call.1} parent=11 // pred_check_branch
          %193 = sbr.rel (%p191) target = $region24
        $region23: #{tpu_custom_call.1} parent=11 // pred_region
          _
        $region24: #{tpu_custom_call.1} parent=11 // pred_fallthru
          _
        // Predicated region
        $region25: #{tpu_custom_call.1} parent=11 // pred_check
          %p194 = pneg %p142
        $region26: #{tpu_custom_call.1} parent=11 // pred_check_branch
          %196 = sbr.rel (%p194) target = $region28
        $region27: #{tpu_custom_call.1} parent=11 // pred_region
          _
        $region28: #{tpu_custom_call.1} parent=11 // pred_fallthru
          _
      $region12: #{tpu_custom_call.1} parent=5 // pred_fallthru
        _
      %p197 = scmp.lt.s32.totalorder %s18, 4
      // Predicated region
      $region29: #{tpu_custom_call.1} parent=5 // pred_check
        %p198 = pneg %p197
      $region30: #{tpu_custom_call.1} parent=5 // pred_check_branch
        %200 = sbr.rel (%p198) target = $region32
      $region31: #{tpu_custom_call.1} parent=5 // pred_region
        // Predicated region
        $region33: #{tpu_custom_call.1} parent=31 // pred_check
          %p201 = pneg %p52
        $region34: #{tpu_custom_call.1} parent=31 // pred_check_branch
          %203 = sbr.rel (%p201) target = $region36
        $region35: #{tpu_custom_call.1} parent=31 // pred_region
          %s204 = sand.u32 %s42, 1
          %s205 = scalar_lea.sflag [#allocation5], %s204
          %s206 = sand.u32 %s42, 1
          %s207 = smul.addr %s206, 128
          %s208 = scalar_lea.vmem [#allocation4], %s207
          %s209 = smul.u32 8, %s26
          %s211 = ssub.s32 2048, 2048
          %212 = vsyncadd %s205, %s211
          %s213 = smul.addr %s209, 2
          %s214 = smul.addr %s25, 32
          %s215 = sadd.s32 %s213, %s214
          %s216 = smul.addr %s215, 128
          %s217 = scalar_lea.hbm %s0, %s216
          %s218 = sshll.u32 %s208, 4
          %s219 = int_to_ptr.vmem [resolvable:$true] %s218
          %224 = dma.hbm_to_vmem [thread:$0]  %s217, 2048, %s219, %s205, 128, 128, 8
        $region36: #{tpu_custom_call.1} parent=31 // pred_fallthru
          _
      $region32: #{tpu_custom_call.1} parent=5 // pred_fallthru
        _
      %p225 = scmp.le.s32.totalorder 1, %s18
      %p226 = scmp.lt.s32.totalorder %s18, 5
      %p227 = pnand %p225, %p226
      %p228 = pneg %p227
      // Predicated region
      $region37: #{tpu_custom_call.1} parent=5 // pred_check
        _
      $region38: #{tpu_custom_call.1} parent=5 // pred_check_branch
        %230 = sbr.rel (%p227) target = $region40
      $region39: #{tpu_custom_call.1} parent=5 // pred_region
        %s231 = ssub.s32 %s18, 1
        %s232 = sand.u32 %s45, 1
        %s233 = scalar_lea.sflag [#allocation5], %s232
        %s234 = sand.u32 %s45, 1
        %s235 = smul.addr %s234, 128
        %s236 = scalar_lea.vmem [#allocation4], %s235
        // Predicated region
        $region41: #{tpu_custom_call.1} parent=39 // pred_check
          %p237 = pneg %p58
        $region42: #{tpu_custom_call.1} parent=39 // pred_check_branch
          %239 = sbr.rel (%p237) target = $region44
        $region43: #{tpu_custom_call.1} parent=39 // pred_region
          %240 = dma.done %s233, 2048
        $region44: #{tpu_custom_call.1} parent=39 // pred_fallthru
          _
        %s241 = sand.u32 %s45, 1
        %s242 = scalar_lea.sflag [#allocation5], %s241
        %s243 = sand.u32 %s45, 1
        %s244 = smul.addr %s243, 128
        %s245 = scalar_lea.vmem [#allocation4], %s244
        %p246 = pneg %p58
        %p247 = pneg %p55
        %p248 = pneg %p79
        %p249 = pneg %p76
        %p250 = pneg %p100
        %p251 = pneg %p97
        %p252 = pneg %p121
        %p253 = pneg %p118
        %p254 = pneg %p142
        %p255 = pneg %p139
        %p256 = pneg %p170
        %p257 = pneg %p167
        %s258 = sand.u32 %s157, 1
        %s259 = scalar_lea.sflag [#allocation6], %s258
        %s260 = sand.u32 %s157, 1
        %s261 = smul.addr %s260, 128
        %s262 = scalar_lea.vmem [#allocation7], %s261
        %s263 = smul.u32 8, %s28
        %s264 = smul.u32 8, %s28
        %s266 = smul.u32 %s28, 8
        %p267 = scmp.gt.s32.totalorder %s28, 0
        %p268 = scmp.lt.s32.totalorder %s28, 1
        // Predicated region
        $region45: #{tpu_custom_call.1} parent=39 // pred_check
          %p269 = pneg %p267
        $region46: #{tpu_custom_call.1} parent=39 // pred_check_branch
          %271 = sbr.rel (%p269) target = $region48
        $region47: #{tpu_custom_call.1} parent=39 // pred_region
          %s272 = ssub.s32 %s266, 1
          %s273 = smul.u32 %s272, 16
          %s274 = smul.u32 %s27, 256
          %s275 = sadd.s32 %s273, %s274
          %s276 = smul.addr %s275, 16
          %s277 = scalar_lea.hbm %s1, %s276
          // Predicated region
          $region49: #{tpu_custom_call.1} parent=47 // pred_check
            _
          $region50: #{tpu_custom_call.1} parent=47 // pred_check_branch
            %279 = sbr.rel target = $region52
          $region51: #{tpu_custom_call.1} parent=47 // pred_region
            %280 = sst [smem:[#allocation10]] [#allocation9]
            %281 = sst [smem:[#allocation11]] [#allocation8]
          $region52: #{tpu_custom_call.1} parent=47 // pred_fallthru
            _
          %283 = shalt.err (0)
          %s285 = sshll.u32 [#allocation2], 4
          %s286 = int_to_ptr.vmem [resolvable:$true] %s285
          %288 = dma.hbm_to_vmem [thread:$0]  %s277, 256, %s286, [#allocation3]
        $region48: #{tpu_custom_call.1} parent=39 // pred_fallthru
          _
        %p289 = scmp.le.s32.totalorder %s28, 0
        // Predicated region
        $region53: #{tpu_custom_call.1} parent=39 // pred_check
          %p290 = pneg %p289
        $region54: #{tpu_custom_call.1} parent=39 // pred_check_branch
          %292 = sbr.rel (%p290) target = $region56
        $region55: #{tpu_custom_call.1} parent=39 // pred_region
          %vm293 = vcmask 130048
          %294 = vst.msk [vmem:[#allocation2] sm:$0xff] %vm293, 0.0
          %295 = vst.msk [vmem:[#allocation2 + $0x8] sm:$0xff] %vm293, 0.0
        $region56: #{tpu_custom_call.1} parent=39 // pred_fallthru
          _
        // Predicated region
        $region57: #{tpu_custom_call.1} parent=39 // pred_check
          %p296 = pneg %p268
        $region58: #{tpu_custom_call.1} parent=39 // pred_check_branch
          %298 = sbr.rel (%p296) target = $region60
        $region59: #{tpu_custom_call.1} parent=39 // pred_region
          %s299 = sadd.s32 %s266, 8
          %s300 = smul.u32 %s299, 16
          %s301 = smul.u32 %s27, 256
          %s302 = sadd.s32 %s300, %s301
          %s303 = smul.addr %s302, 16
          %s304 = scalar_lea.hbm %s1, %s303
          %s305 = scalar_lea.vmem [#allocation2], 16
          %s306 = scalar_lea.sflag [#allocation3], 1
          // Predicated region
          $region61: #{tpu_custom_call.1} parent=59 // pred_check
            _
          $region62: #{tpu_custom_call.1} parent=59 // pred_check_branch
            %308 = sbr.rel target = $region64
          $region63: #{tpu_custom_call.1} parent=59 // pred_region
            %309 = sst [smem:[#allocation10]] [#allocation13]
            %310 = sst [smem:[#allocation11]] [#allocation12]
          $region64: #{tpu_custom_call.1} parent=59 // pred_fallthru
            _
          %312 = shalt.err (0)
          %s314 = sshll.u32 %s305, 4
          %s315 = int_to_ptr.vmem [resolvable:$true] %s314
          %317 = dma.hbm_to_vmem [thread:$0]  %s304, 256, %s315, %s306
        $region60: #{tpu_custom_call.1} parent=39 // pred_fallthru
          _
        %p318 = scmp.ge.s32.totalorder %s28, 1
        // Predicated region
        $region65: #{tpu_custom_call.1} parent=39 // pred_check
          %p319 = pneg %p318
        $region66: #{tpu_custom_call.1} parent=39 // pred_check_branch
          %321 = sbr.rel (%p319) target = $region68
        $region67: #{tpu_custom_call.1} parent=39 // pred_region
          %s322 = scalar_lea.vmem [#allocation2], 16
          %vm323 = vcmask 130048
          %324 = vst.msk [vmem:[%s322] sm:$0xff] %vm323, 0.0
          %325 = vst.msk [vmem:[%s322 + $0x8] sm:$0xff] %vm323, 0.0
        $region68: #{tpu_custom_call.1} parent=39 // pred_fallthru
          _
        %v326 = vld [vmem:[%s236] sm:$0xff]
        %v327 = vld [vmem:[%s236 + $0x8] sm:$0xff]
        %v328 = vld [vmem:[%s236 + $0x10] sm:$0xff]
        %v329 = vld [vmem:[%s236 + $0x18] sm:$0xff]
        %v330 = vld [vmem:[%s236 + $0x20] sm:$0xff]
        %v331 = vld [vmem:[%s236 + $0x28] sm:$0xff]
        %v332 = vld [vmem:[%s236 + $0x30] sm:$0xff]
        %v333 = vld [vmem:[%s236 + $0x38] sm:$0xff]
        %v334 = vld [vmem:[%s236 + $0x40] sm:$0xff]
        %v335 = vld [vmem:[%s236 + $0x48] sm:$0xff]
        %v336 = vld [vmem:[%s236 + $0x50] sm:$0xff]
        %v337 = vld [vmem:[%s236 + $0x58] sm:$0xff]
        %v338 = vld [vmem:[%s236 + $0x60] sm:$0xff]
        %v339 = vld [vmem:[%s236 + $0x68] sm:$0xff]
        %v340 = vld [vmem:[%s236 + $0x70] sm:$0xff]
        %v341 = vld [vmem:[%s236 + $0x78] sm:$0xff]
        %v342 = vpack.c.bf16 %v327, %v326
        %v343 = vpack.c.bf16 %v329, %v328
        %v344 = vpack.c.bf16 %v331, %v330
        %v345 = vpack.c.bf16 %v333, %v332
        %v346 = vpack.c.bf16 %v335, %v334
        %v347 = vpack.c.bf16 %v337, %v336
        %v348 = vpack.c.bf16 %v339, %v338
        %v349 = vpack.c.bf16 %v341, %v340
        %v350 = vld [vmem:[%s2] sm:$0xf]
        %v351 = vld [vmem:[%s2 + $0x4] sm:$0xf]
        %v352 = vld [vmem:[%s3] sm:$0x1]
        %v354 = vlaneseq
        %v355 = vshrl.u32 %v354, 7
        %v356 = vsub.s32 0, %v355
        %v357 = vrot.slane %v352, %v356
        %v361 = vunpack.c.l.b16 %v350
        %v362 = vunpack.c.l.b16 %v351
        %v363 = vpack.c.b16 %v362, %v361
        %vm365 = vcmask 130048
        %v367 = vsel %vm365, %v342, 0
        %v370 = vsel %vm365, %v343, 0
        %v373 = vsel %vm365, %v344, 0
        %v376 = vsel %vm365, %v345, 0
        %v379 = vsel %vm365, %v346, 0
        %v382 = vsel %vm365, %v347, 0
        %v385 = vsel %vm365, %v348, 0
        %v388 = vsel %vm365, %v349, 0
        %390 = vmatprep.subr.bf16.mxu0 0
        %391 = vmatpush1.bf16.msra.mxu0 0
        %392 = vmatprep.subr.bf16.mxu0 0
        %393 = vmatpush1.bf16.msra.mxu0 0
        %394 = vmatprep.subr.bf16.mxu0 0
        %395 = vmatpush1.bf16.msra.mxu0 0
        %396 = vmatprep.subr.bf16.mxu0 0
        %397 = vmatpush1.bf16.msra.mxu0 0
        %398 = vmatprep.subr.bf16.mxu0 0
        %399 = vmatpush1.bf16.msra.mxu0 0
        %400 = vmatprep.subr.bf16.mxu0 0
        %401 = vmatpush1.bf16.msra.mxu0 0
        %402 = vmatprep.subr.bf16.mxu0 0
        %403 = vmatpush1.bf16.msra.mxu0 0
        %404 = vmatprep.subr.bf16.mxu0 0
        %405 = vmatpush1.bf16.msra.mxu0 %v363
        %406 = vmatprep.subr.bf16.mxu0 0
        %407 = vmatpush2.bf16.msra.mxu0 0
        %408 = vmatprep.subr.bf16.mxu0 0
        %409 = vmatpush2.bf16.msra.mxu0 0
        %410 = vmatprep.subr.bf16.mxu0 0
        %411 = vmatpush2.bf16.msra.mxu0 0
        %412 = vmatprep.subr.bf16.mxu0 0
        %413 = vmatpush2.bf16.msra.mxu0 0
        %414 = vmatprep.subr.bf16.mxu0 0
        %415 = vmatpush2.bf16.msra.mxu0 0
        %416 = vmatprep.subr.bf16.mxu0 0
        %417 = vmatpush2.bf16.msra.mxu0 0
        %418 = vmatprep.subr.bf16.mxu0 0
        %419 = vmatpush2.bf16.msra.mxu0 0
        %420 = vmatprep.subr.bf16.mxu0 0
        %421 = vmatpush2.bf16.msra.mxu0 0
        %422 = vmatprep.mubr.bf16.mxu0 0
        %423 = vmatmul.mubr.bf16.gmra.mxu0 %v367
        %v424 = vpop.f32.mrf.mxu0
        %v425 = vadd.f32 %v357, %v424
        %v426 = vpop.f32.mrf.mxu0
        %v427 = vpop.f32.mrf.mxu0
        %v428 = vadd.f32 %v357, %v427
        %v429 = vpop.f32.mrf.mxu0
        %430 = vmatprep.mubr.bf16.mxu0 0
        %431 = vmatmul.mubr.bf16.gmra.mxu0 %v370
        %v432 = vpop.f32.mrf.mxu0
        %v433 = vadd.f32 %v357, %v432
        %v434 = vpop.f32.mrf.mxu0
        %v435 = vpop.f32.mrf.mxu0
        %v436 = vadd.f32 %v357, %v435
        %v437 = vpop.f32.mrf.mxu0
        %438 = vmatprep.mubr.bf16.mxu0 0
        %439 = vmatmul.mubr.bf16.gmra.mxu0 %v373
        %v440 = vpop.f32.mrf.mxu0
        %v441 = vadd.f32 %v357, %v440
        %v442 = vpop.f32.mrf.mxu0
        %v443 = vpop.f32.mrf.mxu0
        %v444 = vadd.f32 %v357, %v443
        %v445 = vpop.f32.mrf.mxu0
        %446 = vmatprep.mubr.bf16.mxu0 0
        %447 = vmatmul.mubr.bf16.gmra.mxu0 %v376
        %v448 = vpop.f32.mrf.mxu0
        %v449 = vadd.f32 %v357, %v448
        %v450 = vpop.f32.mrf.mxu0
        %v451 = vpop.f32.mrf.mxu0
        %v452 = vadd.f32 %v357, %v451
        %v453 = vpop.f32.mrf.mxu0
        %454 = vmatprep.mubr.bf16.mxu0 0
        %455 = vmatmul.mubr.bf16.gmra.mxu0 %v379
        %v456 = vpop.f32.mrf.mxu0
        %v457 = vadd.f32 %v357, %v456
        %v458 = vpop.f32.mrf.mxu0
        %v459 = vpop.f32.mrf.mxu0
        %v460 = vadd.f32 %v357, %v459
        %v461 = vpop.f32.mrf.mxu0
        %462 = vmatprep.mubr.bf16.mxu0 0
        %463 = vmatmul.mubr.bf16.gmra.mxu0 %v382
        %v464 = vpop.f32.mrf.mxu0
        %v465 = vadd.f32 %v357, %v464
        %v466 = vpop.f32.mrf.mxu0
        %v467 = vpop.f32.mrf.mxu0
        %v468 = vadd.f32 %v357, %v467
        %v469 = vpop.f32.mrf.mxu0
        %470 = vmatprep.mubr.bf16.mxu0 0
        %471 = vmatmul.mubr.bf16.gmra.mxu0 %v385
        %v472 = vpop.f32.mrf.mxu0
        %v473 = vadd.f32 %v357, %v472
        %v474 = vpop.f32.mrf.mxu0
        %v475 = vpop.f32.mrf.mxu0
        %v476 = vadd.f32 %v357, %v475
        %v477 = vpop.f32.mrf.mxu0
        %478 = vmatprep.mubr.bf16.mxu0 0
        %479 = vmatmul.mubr.bf16.gmra.mxu0 %v388
        %v480 = vpop.f32.mrf.mxu0
        %v481 = vadd.f32 %v357, %v480
        %v482 = vpop.f32.mrf.mxu0
        %v483 = vpop.f32.mrf.mxu0
        %v484 = vadd.f32 %v357, %v483
        %v485 = vpop.f32.mrf.mxu0
        %486 = vdwg.mxu0
        %vm487 = vcmp.gt.f32.partialorder %v425, 0.0
        %vm488 = vcmp.gt.f32.partialorder %v428, 0.0
        %vm489 = vcmp.gt.f32.partialorder %v433, 0.0
        %vm490 = vcmp.gt.f32.partialorder %v436, 0.0
        %vm491 = vcmp.gt.f32.partialorder %v441, 0.0
        %vm492 = vcmp.gt.f32.partialorder %v444, 0.0
        %vm493 = vcmp.gt.f32.partialorder %v449, 0.0
        %vm494 = vcmp.gt.f32.partialorder %v452, 0.0
        %vm495 = vcmp.gt.f32.partialorder %v457, 0.0
        %vm496 = vcmp.gt.f32.partialorder %v460, 0.0
        %vm497 = vcmp.gt.f32.partialorder %v465, 0.0
        %vm498 = vcmp.gt.f32.partialorder %v468, 0.0
        %vm499 = vcmp.gt.f32.partialorder %v473, 0.0
        %vm500 = vcmp.gt.f32.partialorder %v476, 0.0
        %vm501 = vcmp.gt.f32.partialorder %v481, 0.0
        %vm502 = vcmp.gt.f32.partialorder %v484, 0.0
        %v503 = vmul.f32 %v425, 0.1
        %v504 = vmul.f32 %v428, 0.1
        %v505 = vmul.f32 %v433, 0.1
        %v506 = vmul.f32 %v436, 0.1
        %v507 = vmul.f32 %v441, 0.1
        %v508 = vmul.f32 %v444, 0.1
        %v509 = vmul.f32 %v449, 0.1
        %v510 = vmul.f32 %v452, 0.1
        %v511 = vmul.f32 %v457, 0.1
        %v512 = vmul.f32 %v460, 0.1
        %v513 = vmul.f32 %v465, 0.1
        %v514 = vmul.f32 %v468, 0.1
        %v515 = vmul.f32 %v473, 0.1
        %v516 = vmul.f32 %v476, 0.1
        %v517 = vmul.f32 %v481, 0.1
        %v518 = vmul.f32 %v484, 0.1
        %v519 = vsel %vm487, %v425, %v503
        %v520 = vsel %vm488, %v428, %v504
        %v521 = vsel %vm489, %v433, %v505
        %v522 = vsel %vm490, %v436, %v506
        %v523 = vsel %vm491, %v441, %v507
        %v524 = vsel %vm492, %v444, %v508
        %v525 = vsel %vm493, %v449, %v509
        %v526 = vsel %vm494, %v452, %v510
        %v527 = vsel %vm495, %v457, %v511
        %v528 = vsel %vm496, %v460, %v512
        %v529 = vsel %vm497, %v465, %v513
        %v530 = vsel %vm498, %v468, %v514
        %v531 = vsel %vm499, %v473, %v515
        %v532 = vsel %vm500, %v476, %v516
        %v533 = vsel %vm501, %v481, %v517
        %v534 = vsel %vm502, %v484, %v518
        %v535 = vpack.c.bf16 %v520, %v519
        %v536 = vpack.c.bf16 %v522, %v521
        %v537 = vpack.c.bf16 %v524, %v523
        %v538 = vpack.c.bf16 %v526, %v525
        %v539 = vpack.c.bf16 %v528, %v527
        %v540 = vpack.c.bf16 %v530, %v529
        %v541 = vpack.c.bf16 %v532, %v531
        %v542 = vpack.c.bf16 %v534, %v533
        // Predicated region
        $region69: #{tpu_custom_call.1} parent=39 // pred_check
          %p543 = pneg %p267
        $region70: #{tpu_custom_call.1} parent=39 // pred_check_branch
          %545 = sbr.rel (%p543) target = $region72
        $region71: #{tpu_custom_call.1} parent=39 // pred_region
          %s546 = smul.u32 16, 1
          %s547 = sshll.u32 %s546, 4
          %548 = dma.done [#allocation3], %s547
        $region72: #{tpu_custom_call.1} parent=39 // pred_fallthru
          _
        // Predicated region
        $region73: #{tpu_custom_call.1} parent=39 // pred_check
          %p549 = pneg %p268
        $region74: #{tpu_custom_call.1} parent=39 // pred_check_branch
          %551 = sbr.rel (%p549) target = $region76
        $region75: #{tpu_custom_call.1} parent=39 // pred_region
          %s552 = scalar_lea.sflag [#allocation3], 1
          %s553 = smul.u32 16, 1
          %s554 = sshll.u32 %s553, 4
          %555 = dma.done %s552, %s554
        $region76: #{tpu_custom_call.1} parent=39 // pred_fallthru
          _
        %v556 = vld [vmem:[#allocation2] sm:$0xff]
        %v557 = vld [vmem:[#allocation2 + $0x8] sm:$0xff]
        %v558 = vld [vmem:[#allocation2 + $0x10] sm:$0xff]
        %v559 = vld [vmem:[#allocation2 + $0x18] sm:$0xff]
        %v560 = vpack.c.bf16 %v557, %v556
        %v561 = vpack.c.bf16 %v559, %v558
        %v562 = vld [vmem:[%s2] sm:$0xf]
        %v563 = vld [vmem:[%s2 + $0x4] sm:$0xf]
        %v564 = vld [vmem:[%s3] sm:$0x1]
        %v566 = vlaneseq
        %v567 = vshrl.u32 %v566, 7
        %v568 = vsub.s32 0, %v567
        %v569 = vrot.slane %v564, %v568
        %v573 = vunpack.c.l.b16 %v562
        %v574 = vunpack.c.l.b16 %v563
        %v575 = vpack.c.b16 %v574, %v573
        %v578 = vsel %vm365, %v560, 0
        %v581 = vsel %vm365, %v561, 0
        %583 = vmatprep.subr.bf16.mxu0 0
        %584 = vmatpush1.bf16.msra.mxu0 0
        %585 = vmatprep.subr.bf16.mxu0 0
        %586 = vmatpush1.bf16.msra.mxu0 0
        %587 = vmatprep.subr.bf16.mxu0 0
        %588 = vmatpush1.bf16.msra.mxu0 0
        %589 = vmatprep.subr.bf16.mxu0 0
        %590 = vmatpush1.bf16.msra.mxu0 0
        %591 = vmatprep.subr.bf16.mxu0 0
        %592 = vmatpush1.bf16.msra.mxu0 0
        %593 = vmatprep.subr.bf16.mxu0 0
        %594 = vmatpush1.bf16.msra.mxu0 0
        %595 = vmatprep.subr.bf16.mxu0 0
        %596 = vmatpush1.bf16.msra.mxu0 0
        %597 = vmatprep.subr.bf16.mxu0 0
        %598 = vmatpush1.bf16.msra.mxu0 %v575
        %599 = vmatprep.subr.bf16.mxu0 0
        %600 = vmatpush2.bf16.msra.mxu0 0
        %601 = vmatprep.subr.bf16.mxu0 0
        %602 = vmatpush2.bf16.msra.mxu0 0
        %603 = vmatprep.subr.bf16.mxu0 0
        %604 = vmatpush2.bf16.msra.mxu0 0
        %605 = vmatprep.subr.bf16.mxu0 0
        %606 = vmatpush2.bf16.msra.mxu0 0
        %607 = vmatprep.subr.bf16.mxu0 0
        %608 = vmatpush2.bf16.msra.mxu0 0
        %609 = vmatprep.subr.bf16.mxu0 0
        %610 = vmatpush2.bf16.msra.mxu0 0
        %611 = vmatprep.subr.bf16.mxu0 0
        %612 = vmatpush2.bf16.msra.mxu0 0
        %613 = vmatprep.subr.bf16.mxu0 0
        %614 = vmatpush2.bf16.msra.mxu0 0
        %615 = vmatprep.mubr.bf16.mxu0 0
        %616 = vmatmul.mubr.bf16.gmra.mxu0 %v578
        %v617 = vpop.f32.mrf.mxu0
        %v618 = vadd.f32 %v569, %v617
        %v619 = vpop.f32.mrf.mxu0
        %v620 = vpop.f32.mrf.mxu0
        %v621 = vadd.f32 %v569, %v620
        %v622 = vpop.f32.mrf.mxu0
        %623 = vmatprep.mubr.bf16.mxu0 0
        %624 = vmatmul.mubr.bf16.gmra.mxu0 %v581
        %v625 = vpop.f32.mrf.mxu0
        %v626 = vadd.f32 %v569, %v625
        %v627 = vpop.f32.mrf.mxu0
        %v628 = vpop.f32.mrf.mxu0
        %v629 = vadd.f32 %v569, %v628
        %v630 = vpop.f32.mrf.mxu0
        %631 = vdwg.mxu0
        %vm632 = vcmp.gt.f32.partialorder %v618, 0.0
        %vm633 = vcmp.gt.f32.partialorder %v621, 0.0
        %vm634 = vcmp.gt.f32.partialorder %v626, 0.0
        %vm635 = vcmp.gt.f32.partialorder %v629, 0.0
        %v636 = vmul.f32 %v618, 0.1
        %v637 = vmul.f32 %v621, 0.1
        %v638 = vmul.f32 %v626, 0.1
        %v639 = vmul.f32 %v629, 0.1
        %v640 = vsel %vm632, %v618, %v636
        %v641 = vsel %vm633, %v621, %v637
        %v642 = vsel %vm634, %v626, %v638
        %v643 = vsel %vm635, %v629, %v639
        %v644 = vpack.c.bf16 %v641, %v640
        %v645 = vpack.c.bf16 %v643, %v642
        %s646 = scalar_select %p267, 1, 0
        %v647 = vstv %s646
        %vm648 = vcmp.eq.s32.totalorder %v647, 1
        %v649 = vsel %vm648, %v644, 0
        %s650 = scalar_select %p268, 1, 0
        %v651 = vstv %s650
        %vm652 = vcmp.eq.s32.totalorder %v651, 1
        %v653 = vsel %vm652, %v645, 0
        %v655 = vshrl.u32 %v649, 16
        %v657 = vrot.slane %v655, 7
        %v658 = vshll.u32 %v649, 16
        %v660 = vor.u32 %v657, %v658
        %v662 = vshrl.u32 %v535, 16
        %v664 = vrot.slane %v662, 7
        %v665 = vshll.u32 %v535, 16
        %v667 = vor.u32 %v664, %v665
        %v669 = vshrl.u32 %v536, 16
        %v671 = vrot.slane %v669, 7
        %v672 = vshll.u32 %v536, 16
        %v674 = vor.u32 %v671, %v672
        %v676 = vshrl.u32 %v537, 16
        %v678 = vrot.slane %v676, 7
        %v679 = vshll.u32 %v537, 16
        %v681 = vor.u32 %v678, %v679
        %v683 = vshrl.u32 %v538, 16
        %v685 = vrot.slane %v683, 7
        %v686 = vshll.u32 %v538, 16
        %v688 = vor.u32 %v685, %v686
        %v690 = vshrl.u32 %v539, 16
        %v692 = vrot.slane %v690, 7
        %v693 = vshll.u32 %v539, 16
        %v695 = vor.u32 %v692, %v693
        %v697 = vshrl.u32 %v540, 16
        %v699 = vrot.slane %v697, 7
        %v700 = vshll.u32 %v540, 16
        %v702 = vor.u32 %v699, %v700
        %v704 = vshrl.u32 %v541, 16
        %v706 = vrot.slane %v704, 7
        %v707 = vshll.u32 %v541, 16
        %v709 = vor.u32 %v706, %v707
        %v711 = vshrl.u32 %v542, 16
        %v713 = vrot.slane %v711, 7
        %v714 = vshll.u32 %v542, 16
        %v716 = vor.u32 %v713, %v714
        %v718 = vshrl.u32 %v653, 16
        %v720 = vrot.slane %v718, 7
        %v721 = vshll.u32 %v653, 16
        %v723 = vor.u32 %v720, %v721
        %vm734 = vcmask 1040384
        %vm735 = vsmask.f32 256
        %vm736 = vmand %vm734, %vm735
        %v737 = vsel %vm736, 0, %v660
        %v738 = vsel %vm736, 0, %v667
        %v739 = vsel %vm736, 0, %v674
        %v740 = vsel %vm736, 0, %v681
        %v741 = vsel %vm736, 0, %v688
        %v742 = vsel %vm736, 0, %v695
        %v743 = vsel %vm736, 0, %v702
        %v744 = vsel %vm736, 0, %v709
        %v745 = vsel %vm736, 0, %v716
        %v746 = vsel %vm736, 0, %v723
        %v747 = vrot.slane %v658, 1
        %v748 = vor.u32 %v655, %v747
        %v749 = vrot.slane %v665, 1
        %v750 = vor.u32 %v662, %v749
        %v751 = vrot.slane %v672, 1
        %v752 = vor.u32 %v669, %v751
        %v753 = vrot.slane %v679, 1
        %v754 = vor.u32 %v676, %v753
        %v755 = vrot.slane %v686, 1
        %v756 = vor.u32 %v683, %v755
        %v757 = vrot.slane %v693, 1
        %v758 = vor.u32 %v690, %v757
        %v759 = vrot.slane %v700, 1
        %v760 = vor.u32 %v697, %v759
        %v761 = vrot.slane %v707, 1
        %v762 = vor.u32 %v704, %v761
        %v763 = vrot.slane %v714, 1
        %v764 = vor.u32 %v711, %v763
        %v765 = vrot.slane %v721, 1
        %v766 = vor.u32 %v718, %v765
        %vm777 = vcmask 1047552
        %vm778 = vsmask.f32 7424
        %vm779 = vmand %vm777, %vm778
        %v780 = vsel %vm779, %v748, 0
        %v781 = vsel %vm779, %v750, 0
        %v782 = vsel %vm779, %v752, 0
        %v783 = vsel %vm779, %v754, 0
        %v784 = vsel %vm779, %v756, 0
        %v785 = vsel %vm779, %v758, 0
        %v786 = vsel %vm779, %v760, 0
        %v787 = vsel %vm779, %v762, 0
        %v788 = vsel %vm779, %v764, 0
        %v789 = vsel %vm779, %v766, 0
        %798 = vrot.lane.b32.xlu0 %v649, 8
        %v799 = vpop.permute.xlu0 %798
        %800 = vrot.lane.b32.xlu0 %v535, 8
        %v801 = vpop.permute.xlu0 %800
        %802 = vrot.lane.b32.xlu0 %v536, 8
        %v803 = vpop.permute.xlu0 %802
        %804 = vrot.lane.b32.xlu0 %v537, 8
        %v805 = vpop.permute.xlu0 %804
        %806 = vrot.lane.b32.xlu0 %v538, 8
        %v807 = vpop.permute.xlu0 %806
        %808 = vrot.lane.b32.xlu0 %v539, 8
        %v809 = vpop.permute.xlu0 %808
        %810 = vrot.lane.b32.xlu0 %v540, 8
        %v811 = vpop.permute.xlu0 %810
        %812 = vrot.lane.b32.xlu0 %v541, 8
        %v813 = vpop.permute.xlu0 %812
        %822 = vrot.lane.b32.xlu0 %v780, 16
        %v823 = vpop.permute.xlu0 %822
        %824 = vrot.lane.b32.xlu0 %v781, 16
        %v825 = vpop.permute.xlu0 %824
        %826 = vrot.lane.b32.xlu0 %v782, 16
        %v827 = vpop.permute.xlu0 %826
        %828 = vrot.lane.b32.xlu0 %v783, 16
        %v829 = vpop.permute.xlu0 %828
        %830 = vrot.lane.b32.xlu0 %v784, 16
        %v831 = vpop.permute.xlu0 %830
        %832 = vrot.lane.b32.xlu0 %v785, 16
        %v833 = vpop.permute.xlu0 %832
        %834 = vrot.lane.b32.xlu0 %v786, 16
        %v835 = vpop.permute.xlu0 %834
        %836 = vrot.lane.b32.xlu0 %v787, 16
        %v837 = vpop.permute.xlu0 %836
        %846 = vrot.lane.b32.xlu0 %v738, 24
        %v847 = vpop.permute.xlu0 %846
        %848 = vrot.lane.b32.xlu0 %v739, 24
        %v849 = vpop.permute.xlu0 %848
        %850 = vrot.lane.b32.xlu0 %v740, 24
        %v851 = vpop.permute.xlu0 %850
        %852 = vrot.lane.b32.xlu0 %v741, 24
        %v853 = vpop.permute.xlu0 %852
        %854 = vrot.lane.b32.xlu0 %v742, 24
        %v855 = vpop.permute.xlu0 %854
        %856 = vrot.lane.b32.xlu0 %v743, 24
        %v857 = vpop.permute.xlu0 %856
        %858 = vrot.lane.b32.xlu0 %v744, 24
        %v859 = vpop.permute.xlu0 %858
        %860 = vrot.lane.b32.xlu0 %v745, 24
        %v861 = vpop.permute.xlu0 %860
        %863 = vrot.lane.b32.xlu0 %v535, 32
        %v864 = vpop.permute.xlu0 %863
        %865 = vrot.lane.b32.xlu0 %v536, 32
        %v866 = vpop.permute.xlu0 %865
        %867 = vrot.lane.b32.xlu0 %v537, 32
        %v868 = vpop.permute.xlu0 %867
        %869 = vrot.lane.b32.xlu0 %v538, 32
        %v870 = vpop.permute.xlu0 %869
        %871 = vrot.lane.b32.xlu0 %v539, 32
        %v872 = vpop.permute.xlu0 %871
        %873 = vrot.lane.b32.xlu0 %v540, 32
        %v874 = vpop.permute.xlu0 %873
        %875 = vrot.lane.b32.xlu0 %v541, 32
        %v876 = vpop.permute.xlu0 %875
        %877 = vrot.lane.b32.xlu0 %v542, 32
        %v878 = vpop.permute.xlu0 %877
        %880 = vrot.lane.b32.xlu0 %v781, 40
        %v881 = vpop.permute.xlu0 %880
        %882 = vrot.lane.b32.xlu0 %v782, 40
        %v883 = vpop.permute.xlu0 %882
        %884 = vrot.lane.b32.xlu0 %v783, 40
        %v885 = vpop.permute.xlu0 %884
        %886 = vrot.lane.b32.xlu0 %v784, 40
        %v887 = vpop.permute.xlu0 %886
        %888 = vrot.lane.b32.xlu0 %v785, 40
        %v889 = vpop.permute.xlu0 %888
        %890 = vrot.lane.b32.xlu0 %v786, 40
        %v891 = vpop.permute.xlu0 %890
        %892 = vrot.lane.b32.xlu0 %v787, 40
        %v893 = vpop.permute.xlu0 %892
        %894 = vrot.lane.b32.xlu0 %v788, 40
        %v895 = vpop.permute.xlu0 %894
        %897 = vrot.lane.b32.xlu0 %v739, 48
        %v898 = vpop.permute.xlu0 %897
        %899 = vrot.lane.b32.xlu0 %v740, 48
        %v900 = vpop.permute.xlu0 %899
        %901 = vrot.lane.b32.xlu0 %v741, 48
        %v902 = vpop.permute.xlu0 %901
        %903 = vrot.lane.b32.xlu0 %v742, 48
        %v904 = vpop.permute.xlu0 %903
        %905 = vrot.lane.b32.xlu0 %v743, 48
        %v906 = vpop.permute.xlu0 %905
        %907 = vrot.lane.b32.xlu0 %v744, 48
        %v908 = vpop.permute.xlu0 %907
        %909 = vrot.lane.b32.xlu0 %v745, 48
        %v910 = vpop.permute.xlu0 %909
        %911 = vrot.lane.b32.xlu0 %v746, 48
        %v912 = vpop.permute.xlu0 %911
        %914 = vrot.lane.b32.xlu0 %v536, 56
        %v915 = vpop.permute.xlu0 %914
        %916 = vrot.lane.b32.xlu0 %v537, 56
        %v917 = vpop.permute.xlu0 %916
        %918 = vrot.lane.b32.xlu0 %v538, 56
        %v919 = vpop.permute.xlu0 %918
        %920 = vrot.lane.b32.xlu0 %v539, 56
        %v921 = vpop.permute.xlu0 %920
        %922 = vrot.lane.b32.xlu0 %v540, 56
        %v923 = vpop.permute.xlu0 %922
        %924 = vrot.lane.b32.xlu0 %v541, 56
        %v925 = vpop.permute.xlu0 %924
        %926 = vrot.lane.b32.xlu0 %v542, 56
        %v927 = vpop.permute.xlu0 %926
        %928 = vrot.lane.b32.xlu0 %v653, 56
        %v929 = vpop.permute.xlu0 %928
        %931 = vrot.lane.b32.xlu0 %v782, 64
        %v932 = vpop.permute.xlu0 %931
        %933 = vrot.lane.b32.xlu0 %v783, 64
        %v934 = vpop.permute.xlu0 %933
        %935 = vrot.lane.b32.xlu0 %v784, 64
        %v936 = vpop.permute.xlu0 %935
        %937 = vrot.lane.b32.xlu0 %v785, 64
        %v938 = vpop.permute.xlu0 %937
        %939 = vrot.lane.b32.xlu0 %v786, 64
        %v940 = vpop.permute.xlu0 %939
        %941 = vrot.lane.b32.xlu0 %v787, 64
        %v942 = vpop.permute.xlu0 %941
        %943 = vrot.lane.b32.xlu0 %v788, 64
        %v944 = vpop.permute.xlu0 %943
        %945 = vrot.lane.b32.xlu0 %v789, 64
        %v946 = vpop.permute.xlu0 %945
        %vm947 = vcmask 64512
        %v950 = vsel %vm947, %v737, %v799
        %v953 = vsel %vm947, %v738, %v801
        %v956 = vsel %vm947, %v739, %v803
        %v959 = vsel %vm947, %v740, %v805
        %v962 = vsel %vm947, %v741, %v807
        %v965 = vsel %vm947, %v742, %v809
        %v968 = vsel %vm947, %v743, %v811
        %v971 = vsel %vm947, %v744, %v813
        %v973 = vsel %vm365, %v950, %v823
        %v975 = vsel %vm365, %v953, %v825
        %v977 = vsel %vm365, %v956, %v827
        %v979 = vsel %vm365, %v959, %v829
        %v981 = vsel %vm365, %v962, %v831
        %v983 = vsel %vm365, %v965, %v833
        %v985 = vsel %vm365, %v968, %v835
        %v987 = vsel %vm365, %v971, %v837
        %vm988 = vcmask 195584
        %v990 = vsel %vm988, %v973, %v847
        %v992 = vsel %vm988, %v975, %v849
        %v994 = vsel %vm988, %v977, %v851
        %v996 = vsel %vm988, %v979, %v853
        %v998 = vsel %vm988, %v981, %v855
        %v1000 = vsel %vm988, %v983, %v857
        %v1002 = vsel %vm988, %v985, %v859
        %v1004 = vsel %vm988, %v987, %v861
        %vm1005 = vcmask 261120
        %v1007 = vsel %vm1005, %v990, %v864
        %v1009 = vsel %vm1005, %v992, %v866
        %v1011 = vsel %vm1005, %v994, %v868
        %v1013 = vsel %vm1005, %v996, %v870
        %v1015 = vsel %vm1005, %v998, %v872
        %v1017 = vsel %vm1005, %v1000, %v874
        %v1019 = vsel %vm1005, %v1002, %v876
        %v1021 = vsel %vm1005, %v1004, %v878
        %vm1022 = vcmask 326656
        %v1024 = vsel %vm1022, %v1007, %v881
        %v1026 = vsel %vm1022, %v1009, %v883
        %v1028 = vsel %vm1022, %v1011, %v885
        %v1030 = vsel %vm1022, %v1013, %v887
        %v1032 = vsel %vm1022, %v1015, %v889
        %v1034 = vsel %vm1022, %v1017, %v891
        %v1036 = vsel %vm1022, %v1019, %v893
        %v1038 = vsel %vm1022, %v1021, %v895
        %vm1039 = vcmask 392192
        %v1041 = vsel %vm1039, %v1024, %v898
        %v1043 = vsel %vm1039, %v1026, %v900
        %v1045 = vsel %vm1039, %v1028, %v902
        %v1047 = vsel %vm1039, %v1030, %v904
        %v1049 = vsel %vm1039, %v1032, %v906
        %v1051 = vsel %vm1039, %v1034, %v908
        %v1053 = vsel %vm1039, %v1036, %v910
        %v1055 = vsel %vm1039, %v1038, %v912
        %vm1056 = vcmask 457728
        %v1058 = vsel %vm1056, %v1041, %v915
        %v1060 = vsel %vm1056, %v1043, %v917
        %v1062 = vsel %vm1056, %v1045, %v919
        %v1064 = vsel %vm1056, %v1047, %v921
        %v1066 = vsel %vm1056, %v1049, %v923
        %v1068 = vsel %vm1056, %v1051, %v925
        %v1070 = vsel %vm1056, %v1053, %v927
        %v1072 = vsel %vm1056, %v1055, %v929
        %vm1073 = vcmask 523264
        %v1075 = vsel %vm1073, %v1058, %v932
        %v1077 = vsel %vm1073, %v1060, %v934
        %v1079 = vsel %vm1073, %v1062, %v936
        %v1081 = vsel %vm1073, %v1064, %v938
        %v1083 = vsel %vm1073, %v1066, %v940
        %v1085 = vsel %vm1073, %v1068, %v942
        %v1087 = vsel %vm1073, %v1070, %v944
        %v1089 = vsel %vm1073, %v1072, %v946
        %v1090 = vld [vmem:[%s4] sm:$0xf]
        %v1091 = vld [vmem:[%s4 + $0x4] sm:$0xf]
        %v1092 = vld [vmem:[%s4 + $0x8] sm:$0xf]
        %v1093 = vld [vmem:[%s4 + $0xc] sm:$0xf]
        %v1094 = vld [vmem:[%s4 + $0x10] sm:$0xf]
        %v1095 = vld [vmem:[%s4 + $0x14] sm:$0xf]
        %v1096 = vld [vmem:[%s4 + $0x18] sm:$0xf]
        %v1097 = vld [vmem:[%s4 + $0x1c] sm:$0xf]
        %v1098 = vld [vmem:[%s4 + $0x20] sm:$0xf]
        %v1099 = vld [vmem:[%s5] sm:$0x1]
        %v1101 = vlaneseq
        %v1102 = vshrl.u32 %v1101, 7
        %v1103 = vsub.s32 0, %v1102
        %v1104 = vrot.slane %v1099, %v1103
        %v1115 = vunpack.c.l.b16 %v1090
        %v1116 = vunpack.c.l.b16 %v1091
        %v1117 = vunpack.c.l.b16 %v1092
        %v1118 = vunpack.c.l.b16 %v1093
        %v1119 = vunpack.c.l.b16 %v1094
        %v1120 = vunpack.c.l.b16 %v1095
        %v1121 = vunpack.c.l.b16 %v1096
        %v1122 = vunpack.c.l.b16 %v1097
        %v1123 = vunpack.c.l.b16 %v1098
        %v1124 = vpack.c.b16 %v1116, %v1115
        %v1125 = vpack.c.b16 %v1118, %v1117
        %v1126 = vpack.c.b16 %v1120, %v1119
        %v1127 = vpack.c.b16 %v1122, %v1121
        %v1128 = vpack.c.b16 %v1123, %v1123
        %vm1133 = vcmask 588800
        %v1134 = vsel %vm1133, %v1075, 0
        %v1136 = vsel %vm1133, %v1077, 0
        %v1138 = vsel %vm1133, %v1079, 0
        %v1140 = vsel %vm1133, %v1081, 0
        %v1142 = vsel %vm1133, %v1083, 0
        %v1144 = vsel %vm1133, %v1085, 0
        %v1146 = vsel %vm1133, %v1087, 0
        %v1148 = vsel %vm1133, %v1089, 0
        %vm1150 = vcmask 1043456
        %v1152 = vsel %vm1150, %v1128, 0
        %1154 = vmatprep.subr.bf16.mxu0 0
        %1155 = vmatpush1.bf16.msra.mxu0 0
        %1156 = vmatprep.subr.bf16.mxu0 0
        %1157 = vmatpush1.bf16.msra.mxu0 0
        %1158 = vmatprep.subr.bf16.mxu0 0
        %1159 = vmatpush1.bf16.msra.mxu0 0
        %1160 = vmatprep.subr.bf16.mxu0 0
        %1161 = vmatpush1.bf16.msra.mxu0 %v1152
        %1162 = vmatprep.subr.bf16.mxu0 0
        %1163 = vmatpush1.bf16.msra.mxu0 %v1127
        %1164 = vmatprep.subr.bf16.mxu0 0
        %1165 = vmatpush1.bf16.msra.mxu0 %v1126
        %1166 = vmatprep.subr.bf16.mxu0 0
        %1167 = vmatpush1.bf16.msra.mxu0 %v1125
        %1168 = vmatprep.subr.bf16.mxu0 0
        %1169 = vmatpush1.bf16.msra.mxu0 %v1124
        %1170 = vmatprep.subr.bf16.mxu0 0
        %1171 = vmatpush2.bf16.msra.mxu0 0
        %1172 = vmatprep.subr.bf16.mxu0 0
        %1173 = vmatpush2.bf16.msra.mxu0 0
        %1174 = vmatprep.subr.bf16.mxu0 0
        %1175 = vmatpush2.bf16.msra.mxu0 0
        %1176 = vmatprep.subr.bf16.mxu0 0
        %1177 = vmatpush2.bf16.msra.mxu0 0
        %1178 = vmatprep.subr.bf16.mxu0 0
        %1179 = vmatpush2.bf16.msra.mxu0 0
        %1180 = vmatprep.subr.bf16.mxu0 0
        %1181 = vmatpush2.bf16.msra.mxu0 0
        %1182 = vmatprep.subr.bf16.mxu0 0
        %1183 = vmatpush2.bf16.msra.mxu0 0
        %1184 = vmatprep.subr.bf16.mxu0 0
        %1185 = vmatpush2.bf16.msra.mxu0 0
        %1186 = vmatprep.mubr.bf16.mxu0 0
        %1187 = vmatmul.mubr.bf16.gmra.mxu0 %v1134
        %v1188 = vpop.f32.mrf.mxu0
        %v1189 = vadd.f32 %v1104, %v1188
        %v1190 = vpop.f32.mrf.mxu0
        %v1191 = vpop.f32.mrf.mxu0
        %v1192 = vadd.f32 %v1104, %v1191
        %v1193 = vpop.f32.mrf.mxu0
        %1194 = vmatprep.mubr.bf16.mxu0 0
        %1195 = vmatmul.mubr.bf16.gmra.mxu0 %v1136
        %v1196 = vpop.f32.mrf.mxu0
        %v1197 = vadd.f32 %v1104, %v1196
        %v1198 = vpop.f32.mrf.mxu0
        %v1199 = vpop.f32.mrf.mxu0
        %v1200 = vadd.f32 %v1104, %v1199
        %v1201 = vpop.f32.mrf.mxu0
        %1202 = vmatprep.mubr.bf16.mxu0 0
        %1203 = vmatmul.mubr.bf16.gmra.mxu0 %v1138
        %v1204 = vpop.f32.mrf.mxu0
        %v1205 = vadd.f32 %v1104, %v1204
        %v1206 = vpop.f32.mrf.mxu0
        %v1207 = vpop.f32.mrf.mxu0
        %v1208 = vadd.f32 %v1104, %v1207
        %v1209 = vpop.f32.mrf.mxu0
        %1210 = vmatprep.mubr.bf16.mxu0 0
        %1211 = vmatmul.mubr.bf16.gmra.mxu0 %v1140
        %v1212 = vpop.f32.mrf.mxu0
        %v1213 = vadd.f32 %v1104, %v1212
        %v1214 = vpop.f32.mrf.mxu0
        %v1215 = vpop.f32.mrf.mxu0
        %v1216 = vadd.f32 %v1104, %v1215
        %v1217 = vpop.f32.mrf.mxu0
        %1218 = vmatprep.mubr.bf16.mxu0 0
        %1219 = vmatmul.mubr.bf16.gmra.mxu0 %v1142
        %v1220 = vpop.f32.mrf.mxu0
        %v1221 = vadd.f32 %v1104, %v1220
        %v1222 = vpop.f32.mrf.mxu0
        %v1223 = vpop.f32.mrf.mxu0
        %v1224 = vadd.f32 %v1104, %v1223
        %v1225 = vpop.f32.mrf.mxu0
        %1226 = vmatprep.mubr.bf16.mxu0 0
        %1227 = vmatmul.mubr.bf16.gmra.mxu0 %v1144
        %v1228 = vpop.f32.mrf.mxu0
        %v1229 = vadd.f32 %v1104, %v1228
        %v1230 = vpop.f32.mrf.mxu0
        %v1231 = vpop.f32.mrf.mxu0
        %v1232 = vadd.f32 %v1104, %v1231
        %v1233 = vpop.f32.mrf.mxu0
        %1234 = vmatprep.mubr.bf16.mxu0 0
        %1235 = vmatmul.mubr.bf16.gmra.mxu0 %v1146
        %v1236 = vpop.f32.mrf.mxu0
        %v1237 = vadd.f32 %v1104, %v1236
        %v1238 = vpop.f32.mrf.mxu0
        %v1239 = vpop.f32.mrf.mxu0
        %v1240 = vadd.f32 %v1104, %v1239
        %v1241 = vpop.f32.mrf.mxu0
        %1242 = vmatprep.mubr.bf16.mxu0 0
        %1243 = vmatmul.mubr.bf16.gmra.mxu0 %v1148
        %v1244 = vpop.f32.mrf.mxu0
        %v1245 = vadd.f32 %v1104, %v1244
        %v1246 = vpop.f32.mrf.mxu0
        %v1247 = vpop.f32.mrf.mxu0
        %v1248 = vadd.f32 %v1104, %v1247
        %v1249 = vpop.f32.mrf.mxu0
        %1250 = vdwg.mxu0
        %vm1251 = vcmp.gt.f32.partialorder %v1189, 0.0
        %vm1252 = vcmp.gt.f32.partialorder %v1192, 0.0
        %vm1253 = vcmp.gt.f32.partialorder %v1197, 0.0
        %vm1254 = vcmp.gt.f32.partialorder %v1200, 0.0
        %vm1255 = vcmp.gt.f32.partialorder %v1205, 0.0
        %vm1256 = vcmp.gt.f32.partialorder %v1208, 0.0
        %vm1257 = vcmp.gt.f32.partialorder %v1213, 0.0
        %vm1258 = vcmp.gt.f32.partialorder %v1216, 0.0
        %vm1259 = vcmp.gt.f32.partialorder %v1221, 0.0
        %vm1260 = vcmp.gt.f32.partialorder %v1224, 0.0
        %vm1261 = vcmp.gt.f32.partialorder %v1229, 0.0
        %vm1262 = vcmp.gt.f32.partialorder %v1232, 0.0
        %vm1263 = vcmp.gt.f32.partialorder %v1237, 0.0
        %vm1264 = vcmp.gt.f32.partialorder %v1240, 0.0
        %vm1265 = vcmp.gt.f32.partialorder %v1245, 0.0
        %vm1266 = vcmp.gt.f32.partialorder %v1248, 0.0
        %v1267 = vmul.f32 %v1189, 0.1
        %v1268 = vmul.f32 %v1192, 0.1
        %v1269 = vmul.f32 %v1197, 0.1
        %v1270 = vmul.f32 %v1200, 0.1
        %v1271 = vmul.f32 %v1205, 0.1
        %v1272 = vmul.f32 %v1208, 0.1
        %v1273 = vmul.f32 %v1213, 0.1
        %v1274 = vmul.f32 %v1216, 0.1
        %v1275 = vmul.f32 %v1221, 0.1
        %v1276 = vmul.f32 %v1224, 0.1
        %v1277 = vmul.f32 %v1229, 0.1
        %v1278 = vmul.f32 %v1232, 0.1
        %v1279 = vmul.f32 %v1237, 0.1
        %v1280 = vmul.f32 %v1240, 0.1
        %v1281 = vmul.f32 %v1245, 0.1
        %v1282 = vmul.f32 %v1248, 0.1
        %v1283 = vsel %vm1251, %v1189, %v1267
        %v1284 = vsel %vm1252, %v1192, %v1268
        %v1285 = vsel %vm1253, %v1197, %v1269
        %v1286 = vsel %vm1254, %v1200, %v1270
        %v1287 = vsel %vm1255, %v1205, %v1271
        %v1288 = vsel %vm1256, %v1208, %v1272
        %v1289 = vsel %vm1257, %v1213, %v1273
        %v1290 = vsel %vm1258, %v1216, %v1274
        %v1291 = vsel %vm1259, %v1221, %v1275
        %v1292 = vsel %vm1260, %v1224, %v1276
        %v1293 = vsel %vm1261, %v1229, %v1277
        %v1294 = vsel %vm1262, %v1232, %v1278
        %v1295 = vsel %vm1263, %v1237, %v1279
        %v1296 = vsel %vm1264, %v1240, %v1280
        %v1297 = vsel %vm1265, %v1245, %v1281
        %v1298 = vsel %vm1266, %v1248, %v1282
        %v1299 = vadd.f32 %v1283, %v326
        %v1300 = vadd.f32 %v1284, %v327
        %v1301 = vadd.f32 %v1285, %v328
        %v1302 = vadd.f32 %v1286, %v329
        %v1303 = vadd.f32 %v1287, %v330
        %v1304 = vadd.f32 %v1288, %v331
        %v1305 = vadd.f32 %v1289, %v332
        %v1306 = vadd.f32 %v1290, %v333
        %v1307 = vadd.f32 %v1291, %v334
        %v1308 = vadd.f32 %v1292, %v335
        %v1309 = vadd.f32 %v1293, %v336
        %v1310 = vadd.f32 %v1294, %v337
        %v1311 = vadd.f32 %v1295, %v338
        %v1312 = vadd.f32 %v1296, %v339
        %v1313 = vadd.f32 %v1297, %v340
        %v1314 = vadd.f32 %v1298, %v341
        %1315 = vst.msk [vmem:[%s262] sm:$0xff] %vm365, %v1299
        %1316 = vst.msk [vmem:[%s262 + $0x8] sm:$0xff] %vm365, %v1300
        %1317 = vst.msk [vmem:[%s262 + $0x10] sm:$0xff] %vm365, %v1301
        %1318 = vst.msk [vmem:[%s262 + $0x18] sm:$0xff] %vm365, %v1302
        %1319 = vst.msk [vmem:[%s262 + $0x20] sm:$0xff] %vm365, %v1303
        %1320 = vst.msk [vmem:[%s262 + $0x28] sm:$0xff] %vm365, %v1304
        %1321 = vst.msk [vmem:[%s262 + $0x30] sm:$0xff] %vm365, %v1305
        %1322 = vst.msk [vmem:[%s262 + $0x38] sm:$0xff] %vm365, %v1306
        %1323 = vst.msk [vmem:[%s262 + $0x40] sm:$0xff] %vm365, %v1307
        %1324 = vst.msk [vmem:[%s262 + $0x48] sm:$0xff] %vm365, %v1308
        %1325 = vst.msk [vmem:[%s262 + $0x50] sm:$0xff] %vm365, %v1309
        %1326 = vst.msk [vmem:[%s262 + $0x58] sm:$0xff] %vm365, %v1310
        %1327 = vst.msk [vmem:[%s262 + $0x60] sm:$0xff] %vm365, %v1311
        %1328 = vst.msk [vmem:[%s262 + $0x68] sm:$0xff] %vm365, %v1312
        %1329 = vst.msk [vmem:[%s262 + $0x70] sm:$0xff] %vm365, %v1313
        %1330 = vst.msk [vmem:[%s262 + $0x78] sm:$0xff] %vm365, %v1314
        %s1331 = sand.u32 %s157, 1
        %s1332 = scalar_lea.sflag [#allocation6], %s1331
        %s1333 = sand.u32 %s157, 1
        %s1334 = smul.addr %s1333, 128
        %s1335 = scalar_lea.vmem [#allocation7], %s1334
        // Predicated region
        $region77: #{tpu_custom_call.1} parent=39 // pred_check
          %p1336 = pneg %p167
        $region78: #{tpu_custom_call.1} parent=39 // pred_check_branch
          %1338 = sbr.rel (%p1336) target = $region80
        $region79: #{tpu_custom_call.1} parent=39 // pred_region
          %s1339 = smul.u32 8, %s28
          %s1341 = ssub.s32 2048, 2048
          %1342 = vsyncadd %s1332, %s1341
          %s1343 = smul.addr %s1339, 2
          %s1344 = smul.addr %s27, 32
          %s1345 = sadd.s32 %s1343, %s1344
          %s1346 = smul.addr %s1345, 128
          %s1347 = scalar_lea.hbm %s6, %s1346
          %s1348 = sshll.u32 %s1335, 4
          %s1349 = int_to_ptr.vmem [resolvable:$true] %s1348
          %1354 = dma.vmem_to_hbm [thread:$0]  %s1349, 2048, %s1347, %s1332, 128, 128, 8
        $region80: #{tpu_custom_call.1} parent=39 // pred_fallthru
          _
      $region40: #{tpu_custom_call.1} parent=5 // pred_fallthru
        _
      %p1355 = scmp.le.s32.totalorder 2, %s18
      // Predicated region
      $region81: #{tpu_custom_call.1} parent=5 // pred_check
        %p1356 = pneg %p1355
      $region82: #{tpu_custom_call.1} parent=5 // pred_check_branch
        %1358 = sbr.rel (%p1356) target = $region84
      $region83: #{tpu_custom_call.1} parent=5 // pred_region
        %s1359 = ssub.s32 %s18, 2
        // Predicated region
        $region85: #{tpu_custom_call.1} parent=83 // pred_check
          %p1360 = pneg %p173
        $region86: #{tpu_custom_call.1} parent=83 // pred_check_branch
          %1362 = sbr.rel (%p1360) target = $region88
        $region87: #{tpu_custom_call.1} parent=83 // pred_region
          %s1363 = sand.u32 %s158, 1
          %s1364 = scalar_lea.sflag [#allocation6], %s1363
          %s1365 = sand.u32 %s158, 1
          %s1366 = smul.addr %s1365, 128
          %s1367 = scalar_lea.vmem [#allocation7], %s1366
          %1368 = dma.done %s1364, 2048
        $region88: #{tpu_custom_call.1} parent=83 // pred_fallthru
          _
      $region84: #{tpu_custom_call.1} parent=5 // pred_fallthru
        _
    $region6: #{tpu_custom_call.1} parent=1 // loop_footer
      %s22 = sadd.s32 1, %s18
    $region7: #{tpu_custom_call.1} parent=1 // loop_footer_branch
      %17 = sbr.rel target = $region3
    $region8: #{tpu_custom_call.1} parent=1 // loop_exit
      _
    %1369 = vsyncpa [#allocation5], 1
    %s1370 = scalar_lea.sflag [#allocation5], 1
    %1371 = vsyncpa %s1370, 1
    %1372 = vsyncpa [#allocation6], 1
    %s1373 = scalar_lea.sflag [#allocation6], 1
    %1374 = vsyncpa %s1373, 1
  %1375 = vsyncmov [#allocation3]
  %s1376 = vpop.sfrf %1375
  %p1377 = scmp.eq.s32.totalorder %s1376, 0
  %p1378 = pneg %p1377
  %1380 = shalt.err (%p1378)
  %s1381 = scalar_lea.sflag [#allocation3], 1
  %1382 = vsyncmov %s1381
  %s1383 = vpop.sfrf %1382
  %p1384 = scmp.eq.s32.totalorder %s1383, 0
  %p1385 = pneg %p1384
  %1387 = shalt.err (%p1385)

</llo_original>
